<compile_context>
chip_gen: v7x
topology: tpu7x:2x2x1
jax: 0.10.0
libtpu: 0.0.40
codegen_flags: <defaults>
</compile_context>

<pallas_src>
import math

import jax
import jax.numpy as jnp
from jax.experimental import pallas as pl
from jax.experimental.pallas import tpu as pltpu


def _round_up(x, m):
    return (x + m - 1) // m * m


def _vmem_capacity_bytes():
    try:
        return int(pltpu.get_tpu_info().vmem_capacity_bytes)
    except Exception:
        return 128 * 1024 * 1024  # v5e/v6e-like default


def _footprint_bytes(bn, Lp, E, H):
    """Honest per-step VMEM estimate: pipeline buffers + scratch + live temporaries."""
    act = bn * Lp * E * 4                      # one f32 activation slab
    scores = bn * H * Lp * Lp * 4              # f32 scores carry the H factor
    weights = 2 * (4 * E * E * 2 + 8 * 2 * E * 4)
    return 17 * act + 3 * scores + weights


def _pick_block_n(N, Lp, E, H, budget, two_tc):
    """Batch rows per grid step.  Legal sizes: full N, or a multiple of 8 (BlockSpec rule)."""
    def fits(bn):
        return _footprint_bytes(bn, Lp, E, H) <= budget

    cands = {bn for bn in (8, 16, 32) if bn <= N}
    if N <= 32:
        cands.add(N)
    cands = sorted(cands, reverse=True)

    if two_tc:
        # v7x: prefer >=2 balanced parallel steps so both TensorCores get work.
        for bn in cands:
            if pl.cdiv(N, bn) >= 2 and fits(bn):
                return bn
        # TODO(synk): N too small to split into two legal batch blocks -> one TC idles.
    # Single-TC (v5e/v6e): grid steps are a serial loop, so take the largest block that fits
    # (G=1 whenever possible) to amortize the ~0.35us/step overhead and maximize MXU M.
    for bn in cands:
        if fits(bn):
            return bn
    return cands[-1]


def _make_kernel(Nb, Lp, L, E, H, approx_softmax):
    Dh = E // H
    T = Nb * Lp
    BH = Nb * H

    def kernel(x_ref, pos_ref, wqk_ref, wv_ref, wo_ref, vec_ref, out_ref,
               x_res, xq_bm, q_hm, k_hm, v_hm, o_bm):
        # ---- (L, Nb) -> (Nb, L) batch-major relayout, once per row on the VMEM tile
        # (replaces the previous wrapper-side HBM transposes).
        for b in range(Nb):
            xb = x_ref[:, b, :]                                   # (Lp, E) f32
            x_res[b] = xb                                         # f32 residual / value path
            xq_bm[b] = (xb + pos_ref[:, b, :]).astype(jnp.bfloat16)

        # ---- fused projections over every token in the block (M = Nb*Lp), bf16 MXU, f32 acc
        xq2 = xq_bm[...].reshape(T, E)                            # bf16
        x2 = x_res[...].astype(jnp.bfloat16).reshape(T, E)
        qk = jnp.dot(xq2, wqk_ref[...], preferred_element_type=jnp.float32)
        qk = qk + vec_ref[0:1, :]                                 # [bq*scale | bk]
        v = jnp.dot(x2, wv_ref[...], preferred_element_type=jnp.float32)
        v = v + vec_ref[1:2, :E]                                  # bv

        qk3 = qk.astype(jnp.bfloat16).reshape(Nb, Lp, 2 * E)
        v3 = v.astype(jnp.bfloat16).reshape(Nb, Lp, E)

        # ---- ONE head-major relayout pass per tensor (H lane-block copies each)
        for h in range(H):
            q_hm[h] = qk3[:, :, h * Dh:(h + 1) * Dh]
            k_hm[h] = qk3[:, :, E + h * Dh:E + (h + 1) * Dh]
            v_hm[h] = v3[:, :, h * Dh:(h + 1) * Dh]

        qh = q_hm[...].reshape(BH, Lp, Dh)                        # index = h*Nb + b
        kh = k_hm[...].reshape(BH, Lp, Dh)
        vh = v_hm[...].reshape(BH, Lp, Dh)

        # ---- attention core, batched over every (batch row, head); single softmax
        s = jnp.einsum("bld,bmd->blm", qh, kh,
                       preferred_element_type=jnp.float32)        # (BH, Lp, Lp) f32
        if Lp != L:                                               # static: mask padded keys
            key_id = jax.lax.broadcasted_iota(jnp.int32, (BH, Lp, Lp), 2)
            s = jnp.where(key_id < L, s, -jnp.inf)
        s = s - jnp.max(s, axis=-1, keepdims=True)
        p = jnp.exp(s)
        denom = jnp.sum(p, axis=-1, keepdims=True)
        if approx_softmax:
            p = p * pl.reciprocal(denom, approx=True)             # EUP, off the VPU slot
        else:
            p = p / denom
        oh = jnp.einsum("blm,bmd->bld", p.astype(jnp.bfloat16), vh,
                        preferred_element_type=jnp.float32)       # (BH, Lp, Dh) f32

        # ---- heads back to lane-dense (Nb, Lp, E) for a single output projection
        oh4 = oh.astype(jnp.bfloat16).reshape(H, Nb, Lp, Dh)
        for h in range(H):
            o_bm[:, :, h * Dh:(h + 1) * Dh] = oh4[h]

        attn = jnp.dot(o_bm[...].reshape(T, E), wo_ref[...],
                       preferred_element_type=jnp.float32)
        attn = (attn + vec_ref[2:3, :E]).reshape(Nb, Lp, E)       # + bo

        # ---- residual + LayerNorm (f32, eps=1e-5, biased variance over last dim)
        gamma = vec_ref[3:4, :E]
        beta = vec_ref[4:5, :E]
        y = x_res[...] + attn
        mean = jnp.mean(y, axis=-1, keepdims=True)
        var = jnp.mean((y - mean) ** 2, axis=-1, keepdims=True)
        yn = (y - mean) * jax.lax.rsqrt(var + 1e-5)
        outv = (yn * gamma + beta).astype(out_ref.dtype)          # (Nb, Lp, E)

        # write back in the original (L, N, E) layout, one lane-dense column slab per row
        for b in range(Nb):
            out_ref[:, b, :] = outv[b]

    return kernel


def self_attention_layer(tgt, query_pos, params, nhead,
                         block_n=None, approx_softmax=True, out_dtype=None):
    """Mask2Former SelfAttentionLayer.forward_post (normalize_before=False, eval mode).

    tgt, query_pos: (L, N, E) float32, PyTorch nn.MultiheadAttention layout (seq, batch, embed).
    """
    L, N, E = tgt.shape
    H = nhead
    assert E % H == 0
    Dh = E // H
    scale = 1.0 / math.sqrt(Dh)
    out_dtype = tgt.dtype if out_dtype is None else out_dtype

    # L padding: multiple of 8 always; round to 128 at production sizes (L ~ 100 queries)
    # so the (L, L) score matmuls / stores are lane-dense.  Padded keys are masked in-kernel.
    Lp = _round_up(L, 128 if L > 64 else 8)

    vmem_cap = _vmem_capacity_bytes()
    two_tc = vmem_cap <= 72 * 1024 * 1024          # v7x-like: 64 MiB VMEM, 2 TensorCores
    budget = vmem_cap * 3 // 4                     # ~96 MiB on v5e/v6e, ~48 MiB on v7x

    if block_n is None:
        block_n = _pick_block_n(N, Lp, E, H, budget, two_tc)
    block_n = max(1, min(block_n, N))
    G = pl.cdiv(N, block_n)
    Npad = G * block_n

    if Lp != L or Npad != N:
        pad = ((0, Lp - L), (0, Npad - N), (0, 0))
        tgt_p = jnp.pad(tgt, pad)
        pos_p = jnp.pad(query_pos, pad)
    else:
        tgt_p, pos_p = tgt, query_pos

    # Weight prep: pre-transpose (y = x @ W^T), fold 1/sqrt(Dh) into the Q half, fuse Q|K,
    # cast to bf16 for the MXU.
    w_qk = jnp.concatenate([params["wq"].T * scale, params["wk"].T], axis=1)
    w_qk = w_qk.astype(jnp.bfloat16)               # (E, 2E)
    w_v = params["wv"].T.astype(jnp.bfloat16)      # (E, E)
    w_o = params["wo"].T.astype(jnp.bfloat16)      # (E, E)

    # Pack every per-channel vector into one (8, 2E) f32 tile (single DMA / buffer):
    #   row 0: [bq*scale | bk], row 1: bv, row 2: bo, row 3: gamma, row 4: beta.
    vec = jnp.zeros((8, 2 * E), jnp.float32)
    vec = vec.at[0, :E].set(params["bq"] * scale)
    vec = vec.at[0, E:].set(params["bk"])
    vec = vec.at[1, :E].set(params["bv"])
    vec = vec.at[2, :E].set(params["bo"])
    vec = vec.at[3, :E].set(params["ln_w"])
    vec = vec.at[4, :E].set(params["ln_b"])

    kernel = _make_kernel(block_n, Lp, L, E, H, approx_softmax)

    slab = pl.BlockSpec((Lp, block_n, E), lambda b: (0, b, 0))

    def full(shape):
        return pl.BlockSpec(shape, lambda b: tuple(0 for _ in shape))

    fp = _footprint_bytes(block_n, Lp, E, H)
    vmem_limit = int(min(budget, max(int(fp * 1.5), 32 * 1024 * 1024)))

    T = Npad * Lp
    flops = (2 * T * E * (2 * E)        # fused Q|K projection
             + 2 * T * E * E            # V projection
             + 4 * Npad * Lp * Lp * E   # scores + p@v (all heads)
             + 2 * T * E * E)           # output projection
    cost = pl.CostEstimate(
        flops=int(flops),
        transcendentals=int(Npad * H * Lp * Lp),
        bytes_accessed=int(3 * T * E * 4 + 4 * E * E * 2 + 8 * 2 * E * 4),
    )

    out_p = pl.pallas_call(
        kernel,
        out_shape=jax.ShapeDtypeStruct((Lp, Npad, E), out_dtype),
        grid=(G,),
        in_specs=[
            slab,                     # tgt block         (Lp, block_n, E)
            slab,                     # query_pos block   (Lp, block_n, E)
            full((E, 2 * E)),         # [Wq^T*scale | Wk^T]  (bf16)
            full((E, E)),             # Wv^T (bf16)
            full((E, E)),             # Wo^T (bf16)
            full((8, 2 * E)),         # packed biases / LN params (f32)
        ],
        out_specs=slab,
        scratch_shapes=[
            pltpu.VMEM((block_n, Lp, E), jnp.float32),        # x_res  (batch-major residual)
            pltpu.VMEM((block_n, Lp, E), jnp.bfloat16),       # xq_bm  (projection input)
            pltpu.VMEM((H, block_n, Lp, Dh), jnp.bfloat16),   # q head-major
            pltpu.VMEM((H, block_n, Lp, Dh), jnp.bfloat16),   # k head-major
            pltpu.VMEM((H, block_n, Lp, Dh), jnp.bfloat16),   # v head-major
            pltpu.VMEM((block_n, Lp, E), jnp.bfloat16),       # attention output, lane-dense
        ],
        compiler_params=pltpu.CompilerParams(
            dimension_semantics=("parallel",),
            vmem_limit_bytes=vmem_limit,
        ),
        cost_estimate=cost,
    )(tgt_p, pos_p, w_qk, w_v, w_o, vec)

    if Lp != L or Npad != N:
        out_p = out_p[:L, :N]
    return out_p


def reference(tgt, query_pos, params, nhead):
    """Pure-JAX f32 reference mirroring torch.nn.MultiheadAttention + residual + LayerNorm."""
    L, N, E = tgt.shape
    Dh = E // nhead
    xq = tgt + query_pos
    q = jnp.einsum("lne,fe->lnf", xq, params["wq"]) + params["bq"]
    k = jnp.einsum("lne,fe->lnf", xq, params["wk"]) + params["bk"]
    v = jnp.einsum("lne,fe->lnf", tgt, params["wv"]) + params["bv"]

    def split(x):  # (L, N, E) -> (N, H, L, Dh)
        return jnp.transpose(x.reshape(L, N, nhead, Dh), (1, 2, 0, 3))

    qh, kh, vh = split(q), split(k), split(v)
    s = jnp.einsum("nhld,nhmd->nhlm", qh, kh) / math.sqrt(Dh)
    p = jax.nn.softmax(s, axis=-1)
    oh = jnp.einsum("nhlm,nhmd->nhld", p, vh)
    o = jnp.transpose(oh, (2, 0, 1, 3)).reshape(L, N, E)
    attn = jnp.einsum("lne,fe->lnf", o, params["wo"]) + params["bo"]
    y = tgt + attn
    mean = jnp.mean(y, axis=-1, keepdims=True)
    var = jnp.mean((y - mean) ** 2, axis=-1, keepdims=True)
    yn = (y - mean) / jnp.sqrt(var + 1e-5)
    return yn * params["ln_w"] + params["ln_b"]


def xavier_uniform(key, shape):
    fan_out, fan_in = shape
    bound = math.sqrt(6.0 / (fan_in + fan_out))
    return jax.random.uniform(key, shape, jnp.float32, -bound, bound)


if __name__ == "__main__":
    # Small shapes consistent with the module: seq L=8, batch N=2, d_model=32, nhead=4.
    # (Production Mask2Former: d_model=256, nhead=8, L~100 queries -> padded to 128.)
    L, N, E, H = 8, 2, 32, 4
    key = jax.random.PRNGKey(0)
    keys = jax.random.split(key, 10)

    # nn.MultiheadAttention.in_proj_weight is (3E, E), xavier_uniform.  Biases are zero in
    # the real module; use small nonzero values here so the packed bias / LN-affine paths
    # are actually exercised by the check.
    in_proj = xavier_uniform(keys[0], (3 * E, E))
    params = {
        "wq": in_proj[0 * E:1 * E],
        "wk": in_proj[1 * E:2 * E],
        "wv": in_proj[2 * E:3 * E],
        "bq": 0.05 * jax.random.normal(keys[1], (E,), jnp.float32),
        "bk": 0.05 * jax.random.normal(keys[2], (E,), jnp.float32),
        "bv": 0.05 * jax.random.normal(keys[3], (E,), jnp.float32),
        "wo": xavier_uniform(keys[4], (E, E)),     # out_proj.weight
        "bo": 0.05 * jax.random.normal(keys[5], (E,), jnp.float32),
        "ln_w": 1.0 + 0.1 * jax.random.normal(keys[6], (E,), jnp.float32),
        "ln_b": 0.05 * jax.random.normal(keys[7], (E,), jnp.float32),
    }

    tgt = jax.random.normal(keys[8], (L, N, E), jnp.float32)
    query_pos = jax.random.normal(keys[9], (L, N, E), jnp.float32)

    out = self_attention_layer(tgt, query_pos, params, H)
    out = jax.block_until_ready(out)

    ref = reference(tgt, query_pos, params, H)
    assert out.shape == (L, N, E)
    # bf16 MXU operands + approx EUP reciprocal -> ~1e-2-level deviation vs the f32 reference.
    err = float(jnp.max(jnp.abs(out - ref)))
    assert jnp.allclose(out, ref, atol=3e-2, rtol=3e-2), f"mismatch vs reference (max err {err})"

    print("KERNEL_OK")
</pallas_src>

<mosaic_0001>
module attributes {stable_mosaic.version = 11 : i64} {
  func.func @kernel(%arg0: i32, %arg1: memref<8x2x32xf32, #tpu.memory_space<vmem>>, %arg2: memref<8x2x32xf32, #tpu.memory_space<vmem>>, %arg3: memref<32x64xbf16, #tpu.memory_space<vmem>>, %arg4: memref<32x32xbf16, #tpu.memory_space<vmem>>, %arg5: memref<32x32xbf16, #tpu.memory_space<vmem>>, %arg6: memref<8x64xf32, #tpu.memory_space<vmem>>, %arg7: memref<8x2x32xf32, #tpu.memory_space<vmem>>, %arg8: memref<2x8x32xf32, #tpu.memory_space<vmem>>, %arg9: memref<2x8x32xbf16, #tpu.memory_space<vmem>>, %arg10: memref<4x2x8x8xbf16, #tpu.memory_space<vmem>>, %arg11: memref<4x2x8x8xbf16, #tpu.memory_space<vmem>>, %arg12: memref<4x2x8x8xbf16, #tpu.memory_space<vmem>>, %arg13: memref<2x8x32xbf16, #tpu.memory_space<vmem>>) attributes {dimension_semantics = [#tpu.dimension_semantics<parallel>], iteration_bounds = array<i64: 1>, scalar_prefetch = 0 : i64, scratch_operands = 6 : i64, tpu.core_type = #tpu.core_type<tc>, window_params = [{transform_indices = @transform_0, window_bounds = array<i64: 8, 2, 32>}, {transform_indices = @transform_1, window_bounds = array<i64: 8, 2, 32>}, {pipeline_mode = #tpu.pipeline_mode<synchronous>, transform_indices = @transform_2, window_bounds = array<i64: 32, 64>}, {pipeline_mode = #tpu.pipeline_mode<synchronous>, transform_indices = @transform_3, window_bounds = array<i64: 32, 32>}, {pipeline_mode = #tpu.pipeline_mode<synchronous>, transform_indices = @transform_4, window_bounds = array<i64: 32, 32>}, {pipeline_mode = #tpu.pipeline_mode<synchronous>, transform_indices = @transform_5, window_bounds = array<i64: 8, 64>}, {transform_indices = @transform_6, window_bounds = array<i64: 8, 2, 32>}]} {
    %c0 = arith.constant 0 : index
    %c0_0 = arith.constant 0 : index
    %c0_1 = arith.constant 0 : index
    %0 = vector.load %arg1[%c0, %c0_0, %c0_1] : memref<8x2x32xf32, #tpu.memory_space<vmem>>, vector<8x1x32xf32>
    %1 = vector.shape_cast %0 : vector<8x1x32xf32> to vector<8x32xf32>
    %c0_2 = arith.constant 0 : index
    %c0_3 = arith.constant 0 : index
    %c0_4 = arith.constant 0 : index
    %2 = vector.load %arg8[%c0_2, %c0_3, %c0_4] : memref<2x8x32xf32, #tpu.memory_space<vmem>>, vector<1x8x32xf32>
    %3 = vector.shape_cast %2 : vector<1x8x32xf32> to vector<8x32xf32>
    %4 = vector.shape_cast %1 : vector<8x32xf32> to vector<1x8x32xf32>
    tpu.vector_store %arg8[%c0_2, %c0_3, %c0_4], %4 {strides = array<i32>} : memref<2x8x32xf32, #tpu.memory_space<vmem>>, vector<1x8x32xf32>,
    %c0_5 = arith.constant 0 : index
    %c0_6 = arith.constant 0 : index
    %c0_7 = arith.constant 0 : index
    %5 = vector.load %arg2[%c0_5, %c0_6, %c0_7] : memref<8x2x32xf32, #tpu.memory_space<vmem>>, vector<8x1x32xf32>
    %6 = vector.shape_cast %5 : vector<8x1x32xf32> to vector<8x32xf32>
    %7 = arith.addf %1, %6 : vector<8x32xf32>
    %8 = arith.truncf %7 : vector<8x32xf32> to vector<8x32xbf16>
    %c0_8 = arith.constant 0 : index
    %c0_9 = arith.constant 0 : index
    %c0_10 = arith.constant 0 : index
    %9 = vector.load %arg9[%c0_8, %c0_9, %c0_10] : memref<2x8x32xbf16, #tpu.memory_space<vmem>>, vector<1x8x32xbf16>
    %10 = vector.shape_cast %9 : vector<1x8x32xbf16> to vector<8x32xbf16>
    %11 = vector.shape_cast %8 : vector<8x32xbf16> to vector<1x8x32xbf16>
    tpu.vector_store %arg9[%c0_8, %c0_9, %c0_10], %11 {strides = array<i32>} : memref<2x8x32xbf16, #tpu.memory_space<vmem>>, vector<1x8x32xbf16>,
    %c0_11 = arith.constant 0 : index
    %c1 = arith.constant 1 : index
    %c0_12 = arith.constant 0 : index
    %12 = vector.load %arg1[%c0_11, %c1, %c0_12] : memref<8x2x32xf32, #tpu.memory_space<vmem>>, vector<8x1x32xf32>
    %13 = vector.shape_cast %12 : vector<8x1x32xf32> to vector<8x32xf32>
    %c1_13 = arith.constant 1 : index
    %c0_14 = arith.constant 0 : index
    %c0_15 = arith.constant 0 : index
    %14 = vector.load %arg8[%c1_13, %c0_14, %c0_15] : memref<2x8x32xf32, #tpu.memory_space<vmem>>, vector<1x8x32xf32>
    %15 = vector.shape_cast %14 : vector<1x8x32xf32> to vector<8x32xf32>
    %16 = vector.shape_cast %13 : vector<8x32xf32> to vector<1x8x32xf32>
    tpu.vector_store %arg8[%c1_13, %c0_14, %c0_15], %16 {strides = array<i32>} : memref<2x8x32xf32, #tpu.memory_space<vmem>>, vector<1x8x32xf32>,
    %c0_16 = arith.constant 0 : index
    %c1_17 = arith.constant 1 : index
    %c0_18 = arith.constant 0 : index
    %17 = vector.load %arg2[%c0_16, %c1_17, %c0_18] : memref<8x2x32xf32, #tpu.memory_space<vmem>>, vector<8x1x32xf32>
    %18 = vector.shape_cast %17 : vector<8x1x32xf32> to vector<8x32xf32>
    %19 = arith.addf %13, %18 : vector<8x32xf32>
    %20 = arith.truncf %19 : vector<8x32xf32> to vector<8x32xbf16>
    %c1_19 = arith.constant 1 : index
    %c0_20 = arith.constant 0 : index
    %c0_21 = arith.constant 0 : index
    %21 = vector.load %arg9[%c1_19, %c0_20, %c0_21] : memref<2x8x32xbf16, #tpu.memory_space<vmem>>, vector<1x8x32xbf16>
    %22 = vector.shape_cast %21 : vector<1x8x32xbf16> to vector<8x32xbf16>
    %23 = vector.shape_cast %20 : vector<8x32xbf16> to vector<1x8x32xbf16>
    tpu.vector_store %arg9[%c1_19, %c0_20, %c0_21], %23 {strides = array<i32>} : memref<2x8x32xbf16, #tpu.memory_space<vmem>>, vector<1x8x32xbf16>,
    %c0_22 = arith.constant 0 : index
    %c0_23 = arith.constant 0 : index
    %c0_24 = arith.constant 0 : index
    %24 = vector.load %arg9[%c0_22, %c0_23, %c0_24] : memref<2x8x32xbf16, #tpu.memory_space<vmem>>, vector<2x8x32xbf16>
    %25 = vector.shape_cast %24 : vector<2x8x32xbf16> to vector<16x32xbf16>
    %c0_25 = arith.constant 0 : index
    %c0_26 = arith.constant 0 : index
    %c0_27 = arith.constant 0 : index
    %26 = vector.load %arg8[%c0_25, %c0_26, %c0_27] : memref<2x8x32xf32, #tpu.memory_space<vmem>>, vector<2x8x32xf32>
    %27 = arith.truncf %26 : vector<2x8x32xf32> to vector<2x8x32xbf16>
    %28 = vector.shape_cast %27 : vector<2x8x32xbf16> to vector<16x32xbf16>
    %c0_28 = arith.constant 0 : index
    %c0_29 = arith.constant 0 : index
    %29 = vector.load %arg3[%c0_28, %c0_29] : memref<32x64xbf16, #tpu.memory_space<vmem>>, vector<32x64xbf16>
    %cst = arith.constant dense<0.000000e+00> : vector<16x64xf32>
    %30 = tpu.matmul %25, %29, %cst {dimension_numbers = #tpu.dot_dimension_numbers<[1], [0], [0], [1], [0, 0, 1, 1], [], []>} : vector<16x32xbf16>, vector<32x64xbf16>, vector<16x64xf32> -> vector<16x64xf32>
    %c0_30 = arith.constant 0 : index
    %c0_31 = arith.constant 0 : index
    %31 = vector.load %arg6[%c0_30, %c0_31] : memref<8x64xf32, #tpu.memory_space<vmem>>, vector<1x64xf32>
    %32 = vector.broadcast %31 : vector<1x64xf32> to vector<16x64xf32>
    %33 = arith.addf %30, %32 : vector<16x64xf32>
    %c0_32 = arith.constant 0 : index
    %c0_33 = arith.constant 0 : index
    %34 = vector.load %arg4[%c0_32, %c0_33] : memref<32x32xbf16, #tpu.memory_space<vmem>>, vector<32x32xbf16>
    %cst_34 = arith.constant dense<0.000000e+00> : vector<16x32xf32>
    %35 = tpu.matmul %28, %34, %cst_34 {dimension_numbers = #tpu.dot_dimension_numbers<[1], [0], [0], [1], [0, 0, 1, 1], [], []>} : vector<16x32xbf16>, vector<32x32xbf16>, vector<16x32xf32> -> vector<16x32xf32>
    %c1_35 = arith.constant 1 : index
    %c0_36 = arith.constant 0 : index
    %36 = vector.load %arg6[%c1_35, %c0_36] : memref<8x64xf32, #tpu.memory_space<vmem>>, vector<1x32xf32>
    %37 = vector.broadcast %36 : vector<1x32xf32> to vector<16x32xf32>
    %38 = arith.addf %35, %37 : vector<16x32xf32>
    %39 = arith.truncf %33 : vector<16x64xf32> to vector<16x64xbf16>
    %40 = vector.shape_cast %39 : vector<16x64xbf16> to vector<2x8x64xbf16>
    %41 = arith.truncf %38 : vector<16x32xf32> to vector<16x32xbf16>
    %42 = vector.shape_cast %41 : vector<16x32xbf16> to vector<2x8x32xbf16>
    %43 = vector.extract_strided_slice %40 {offsets = [0, 0, 0], sizes = [2, 8, 8], strides = [1, 1, 1]} : vector<2x8x64xbf16> to vector<2x8x8xbf16>
    %c0_37 = arith.constant 0 : index
    %c0_38 = arith.constant 0 : index
    %c0_39 = arith.constant 0 : index
    %c0_40 = arith.constant 0 : index
    %44 = vector.load %arg10[%c0_37, %c0_38, %c0_39, %c0_40] : memref<4x2x8x8xbf16, #tpu.memory_space<vmem>>, vector<1x2x8x8xbf16>
    %45 = vector.shape_cast %44 : vector<1x2x8x8xbf16> to vector<2x8x8xbf16>
    %46 = vector.shape_cast %43 : vector<2x8x8xbf16> to vector<1x2x8x8xbf16>
    tpu.vector_store %arg10[%c0_37, %c0_38, %c0_39, %c0_40], %46 {strides = array<i32>} : memref<4x2x8x8xbf16, #tpu.memory_space<vmem>>, vector<1x2x8x8xbf16>,
    %47 = vector.extract_strided_slice %40 {offsets = [0, 0, 32], sizes = [2, 8, 8], strides = [1, 1, 1]} : vector<2x8x64xbf16> to vector<2x8x8xbf16>
    %c0_41 = arith.constant 0 : index
    %c0_42 = arith.constant 0 : index
    %c0_43 = arith.constant 0 : index
    %c0_44 = arith.constant 0 : index
    %48 = vector.load %arg11[%c0_41, %c0_42, %c0_43, %c0_44] : memref<4x2x8x8xbf16, #tpu.memory_space<vmem>>, vector<1x2x8x8xbf16>
    %49 = vector.shape_cast %48 : vector<1x2x8x8xbf16> to vector<2x8x8xbf16>
    %50 = vector.shape_cast %47 : vector<2x8x8xbf16> to vector<1x2x8x8xbf16>
    tpu.vector_store %arg11[%c0_41, %c0_42, %c0_43, %c0_44], %50 {strides = array<i32>} : memref<4x2x8x8xbf16, #tpu.memory_space<vmem>>, vector<1x2x8x8xbf16>,
    %51 = vector.extract_strided_slice %42 {offsets = [0, 0, 0], sizes = [2, 8, 8], strides = [1, 1, 1]} : vector<2x8x32xbf16> to vector<2x8x8xbf16>
    %c0_45 = arith.constant 0 : index
    %c0_46 = arith.constant 0 : index
    %c0_47 = arith.constant 0 : index
    %c0_48 = arith.constant 0 : index
    %52 = vector.load %arg12[%c0_45, %c0_46, %c0_47, %c0_48] : memref<4x2x8x8xbf16, #tpu.memory_space<vmem>>, vector<1x2x8x8xbf16>
    %53 = vector.shape_cast %52 : vector<1x2x8x8xbf16> to vector<2x8x8xbf16>
    %54 = vector.shape_cast %51 : vector<2x8x8xbf16> to vector<1x2x8x8xbf16>
    tpu.vector_store %arg12[%c0_45, %c0_46, %c0_47, %c0_48], %54 {strides = array<i32>} : memref<4x2x8x8xbf16, #tpu.memory_space<vmem>>, vector<1x2x8x8xbf16>,
    %55 = vector.extract_strided_slice %40 {offsets = [0, 0, 8], sizes = [2, 8, 8], strides = [1, 1, 1]} : vector<2x8x64xbf16> to vector<2x8x8xbf16>
    %c1_49 = arith.constant 1 : index
    %c0_50 = arith.constant 0 : index
    %c0_51 = arith.constant 0 : index
    %c0_52 = arith.constant 0 : index
    %56 = vector.load %arg10[%c1_49, %c0_50, %c0_51, %c0_52] : memref<4x2x8x8xbf16, #tpu.memory_space<vmem>>, vector<1x2x8x8xbf16>
    %57 = vector.shape_cast %56 : vector<1x2x8x8xbf16> to vector<2x8x8xbf16>
    %58 = vector.shape_cast %55 : vector<2x8x8xbf16> to vector<1x2x8x8xbf16>
    tpu.vector_store %arg10[%c1_49, %c0_50, %c0_51, %c0_52], %58 {strides = array<i32>} : memref<4x2x8x8xbf16, #tpu.memory_space<vmem>>, vector<1x2x8x8xbf16>,
    %59 = vector.extract_strided_slice %40 {offsets = [0, 0, 40], sizes = [2, 8, 8], strides = [1, 1, 1]} : vector<2x8x64xbf16> to vector<2x8x8xbf16>
    %c1_53 = arith.constant 1 : index
    %c0_54 = arith.constant 0 : index
    %c0_55 = arith.constant 0 : index
    %c0_56 = arith.constant 0 : index
    %60 = vector.load %arg11[%c1_53, %c0_54, %c0_55, %c0_56] : memref<4x2x8x8xbf16, #tpu.memory_space<vmem>>, vector<1x2x8x8xbf16>
    %61 = vector.shape_cast %60 : vector<1x2x8x8xbf16> to vector<2x8x8xbf16>
    %62 = vector.shape_cast %59 : vector<2x8x8xbf16> to vector<1x2x8x8xbf16>
    tpu.vector_store %arg11[%c1_53, %c0_54, %c0_55, %c0_56], %62 {strides = array<i32>} : memref<4x2x8x8xbf16, #tpu.memory_space<vmem>>, vector<1x2x8x8xbf16>,
    %63 = vector.extract_strided_slice %42 {offsets = [0, 0, 8], sizes = [2, 8, 8], strides = [1, 1, 1]} : vector<2x8x32xbf16> to vector<2x8x8xbf16>
    %c1_57 = arith.constant 1 : index
    %c0_58 = arith.constant 0 : index
    %c0_59 = arith.constant 0 : index
    %c0_60 = arith.constant 0 : index
    %64 = vector.load %arg12[%c1_57, %c0_58, %c0_59, %c0_60] : memref<4x2x8x8xbf16, #tpu.memory_space<vmem>>, vector<1x2x8x8xbf16>
    %65 = vector.shape_cast %64 : vector<1x2x8x8xbf16> to vector<2x8x8xbf16>
    %66 = vector.shape_cast %63 : vector<2x8x8xbf16> to vector<1x2x8x8xbf16>
    tpu.vector_store %arg12[%c1_57, %c0_58, %c0_59, %c0_60], %66 {strides = array<i32>} : memref<4x2x8x8xbf16, #tpu.memory_space<vmem>>, vector<1x2x8x8xbf16>,
    %67 = vector.extract_strided_slice %40 {offsets = [0, 0, 16], sizes = [2, 8, 8], strides = [1, 1, 1]} : vector<2x8x64xbf16> to vector<2x8x8xbf16>
    %c2 = arith.constant 2 : index
    %c0_61 = arith.constant 0 : index
    %c0_62 = arith.constant 0 : index
    %c0_63 = arith.constant 0 : index
    %68 = vector.load %arg10[%c2, %c0_61, %c0_62, %c0_63] : memref<4x2x8x8xbf16, #tpu.memory_space<vmem>>, vector<1x2x8x8xbf16>
    %69 = vector.shape_cast %68 : vector<1x2x8x8xbf16> to vector<2x8x8xbf16>
    %70 = vector.shape_cast %67 : vector<2x8x8xbf16> to vector<1x2x8x8xbf16>
    tpu.vector_store %arg10[%c2, %c0_61, %c0_62, %c0_63], %70 {strides = array<i32>} : memref<4x2x8x8xbf16, #tpu.memory_space<vmem>>, vector<1x2x8x8xbf16>,
    %71 = vector.extract_strided_slice %40 {offsets = [0, 0, 48], sizes = [2, 8, 8], strides = [1, 1, 1]} : vector<2x8x64xbf16> to vector<2x8x8xbf16>
    %c2_64 = arith.constant 2 : index
    %c0_65 = arith.constant 0 : index
    %c0_66 = arith.constant 0 : index
    %c0_67 = arith.constant 0 : index
    %72 = vector.load %arg11[%c2_64, %c0_65, %c0_66, %c0_67] : memref<4x2x8x8xbf16, #tpu.memory_space<vmem>>, vector<1x2x8x8xbf16>
    %73 = vector.shape_cast %72 : vector<1x2x8x8xbf16> to vector<2x8x8xbf16>
    %74 = vector.shape_cast %71 : vector<2x8x8xbf16> to vector<1x2x8x8xbf16>
    tpu.vector_store %arg11[%c2_64, %c0_65, %c0_66, %c0_67], %74 {strides = array<i32>} : memref<4x2x8x8xbf16, #tpu.memory_space<vmem>>, vector<1x2x8x8xbf16>,
    %75 = vector.extract_strided_slice %42 {offsets = [0, 0, 16], sizes = [2, 8, 8], strides = [1, 1, 1]} : vector<2x8x32xbf16> to vector<2x8x8xbf16>
    %c2_68 = arith.constant 2 : index
    %c0_69 = arith.constant 0 : index
    %c0_70 = arith.constant 0 : index
    %c0_71 = arith.constant 0 : index
    %76 = vector.load %arg12[%c2_68, %c0_69, %c0_70, %c0_71] : memref<4x2x8x8xbf16, #tpu.memory_space<vmem>>, vector<1x2x8x8xbf16>
    %77 = vector.shape_cast %76 : vector<1x2x8x8xbf16> to vector<2x8x8xbf16>
    %78 = vector.shape_cast %75 : vector<2x8x8xbf16> to vector<1x2x8x8xbf16>
    tpu.vector_store %arg12[%c2_68, %c0_69, %c0_70, %c0_71], %78 {strides = array<i32>} : memref<4x2x8x8xbf16, #tpu.memory_space<vmem>>, vector<1x2x8x8xbf16>,
    %79 = vector.extract_strided_slice %40 {offsets = [0, 0, 24], sizes = [2, 8, 8], strides = [1, 1, 1]} : vector<2x8x64xbf16> to vector<2x8x8xbf16>
    %c3 = arith.constant 3 : index
    %c0_72 = arith.constant 0 : index
    %c0_73 = arith.constant 0 : index
    %c0_74 = arith.constant 0 : index
    %80 = vector.load %arg10[%c3, %c0_72, %c0_73, %c0_74] : memref<4x2x8x8xbf16, #tpu.memory_space<vmem>>, vector<1x2x8x8xbf16>
    %81 = vector.shape_cast %80 : vector<1x2x8x8xbf16> to vector<2x8x8xbf16>
    %82 = vector.shape_cast %79 : vector<2x8x8xbf16> to vector<1x2x8x8xbf16>
    tpu.vector_store %arg10[%c3, %c0_72, %c0_73, %c0_74], %82 {strides = array<i32>} : memref<4x2x8x8xbf16, #tpu.memory_space<vmem>>, vector<1x2x8x8xbf16>,
    %83 = vector.extract_strided_slice %40 {offsets = [0, 0, 56], sizes = [2, 8, 8], strides = [1, 1, 1]} : vector<2x8x64xbf16> to vector<2x8x8xbf16>
    %c3_75 = arith.constant 3 : index
    %c0_76 = arith.constant 0 : index
    %c0_77 = arith.constant 0 : index
    %c0_78 = arith.constant 0 : index
    %84 = vector.load %arg11[%c3_75, %c0_76, %c0_77, %c0_78] : memref<4x2x8x8xbf16, #tpu.memory_space<vmem>>, vector<1x2x8x8xbf16>
    %85 = vector.shape_cast %84 : vector<1x2x8x8xbf16> to vector<2x8x8xbf16>
    %86 = vector.shape_cast %83 : vector<2x8x8xbf16> to vector<1x2x8x8xbf16>
    tpu.vector_store %arg11[%c3_75, %c0_76, %c0_77, %c0_78], %86 {strides = array<i32>} : memref<4x2x8x8xbf16, #tpu.memory_space<vmem>>, vector<1x2x8x8xbf16>,
    %87 = vector.extract_strided_slice %42 {offsets = [0, 0, 24], sizes = [2, 8, 8], strides = [1, 1, 1]} : vector<2x8x32xbf16> to vector<2x8x8xbf16>
    %c3_79 = arith.constant 3 : index
    %c0_80 = arith.constant 0 : index
    %c0_81 = arith.constant 0 : index
    %c0_82 = arith.constant 0 : index
    %88 = vector.load %arg12[%c3_79, %c0_80, %c0_81, %c0_82] : memref<4x2x8x8xbf16, #tpu.memory_space<vmem>>, vector<1x2x8x8xbf16>
    %89 = vector.shape_cast %88 : vector<1x2x8x8xbf16> to vector<2x8x8xbf16>
    %90 = vector.shape_cast %87 : vector<2x8x8xbf16> to vector<1x2x8x8xbf16>
    tpu.vector_store %arg12[%c3_79, %c0_80, %c0_81, %c0_82], %90 {strides = array<i32>} : memref<4x2x8x8xbf16, #tpu.memory_space<vmem>>, vector<1x2x8x8xbf16>,
    %c0_83 = arith.constant 0 : index
    %c0_84 = arith.constant 0 : index
    %c0_85 = arith.constant 0 : index
    %c0_86 = arith.constant 0 : index
    %91 = vector.load %arg10[%c0_83, %c0_84, %c0_85, %c0_86] : memref<4x2x8x8xbf16, #tpu.memory_space<vmem>>, vector<4x2x8x8xbf16>
    %92 = vector.shape_cast %91 : vector<4x2x8x8xbf16> to vector<8x8x8xbf16>
    %c0_87 = arith.constant 0 : index
    %c0_88 = arith.constant 0 : index
    %c0_89 = arith.constant 0 : index
    %c0_90 = arith.constant 0 : index
    %93 = vector.load %arg11[%c0_87, %c0_88, %c0_89, %c0_90] : memref<4x2x8x8xbf16, #tpu.memory_space<vmem>>, vector<4x2x8x8xbf16>
    %94 = vector.shape_cast %93 : vector<4x2x8x8xbf16> to vector<8x8x8xbf16>
    %c0_91 = arith.constant 0 : index
    %c0_92 = arith.constant 0 : index
    %c0_93 = arith.constant 0 : index
    %c0_94 = arith.constant 0 : index
    %95 = vector.load %arg12[%c0_91, %c0_92, %c0_93, %c0_94] : memref<4x2x8x8xbf16, #tpu.memory_space<vmem>>, vector<4x2x8x8xbf16>
    %96 = vector.shape_cast %95 : vector<4x2x8x8xbf16> to vector<8x8x8xbf16>
    "tpu.trace_start"() <{level = 10 : i32, message = "bld,bmd->blm"}> : () -> ()
    %cst_95 = arith.constant dense<0.000000e+00> : vector<8x8x8xf32>
    %97 = tpu.matmul %92, %94, %cst_95 {dimension_numbers = #tpu.dot_dimension_numbers<[2], [2], [1], [1], [0, 0, 0, 1, 1, 1], [0], [0]>} : vector<8x8x8xbf16>, vector<8x8x8xbf16>, vector<8x8x8xf32> -> vector<8x8x8xf32>
    "tpu.trace_stop"() : () -> ()
    %cst_96 = arith.constant dense<0xFF800000> : vector<8x8xf32>
    %98 = vector.multi_reduction <maximumf>, %97, %cst_96 [2] : vector<8x8x8xf32> to vector<8x8xf32>
    %99 = vector.shape_cast %98 : vector<8x8xf32> to vector<8x8x1xf32>
    %100 = vector.broadcast %99 : vector<8x8x1xf32> to vector<8x8x8xf32>
    %101 = arith.subf %97, %100 : vector<8x8x8xf32>
    %102 = math.exp %101 : vector<8x8x8xf32>
    %cst_97 = arith.constant dense<0.000000e+00> : vector<8x8xf32>
    %103 = vector.multi_reduction <add>, %102, %cst_97 [2] : vector<8x8x8xf32> to vector<8x8xf32>
    %104 = vector.shape_cast %103 : vector<8x8xf32> to vector<8x8x1xf32>
    %105 = tpu.reciprocal %104 {approx = true} : vector<8x8x1xf32> -> vector<8x8x1xf32>
    %106 = vector.broadcast %105 : vector<8x8x1xf32> to vector<8x8x8xf32>
    %107 = arith.mulf %102, %106 : vector<8x8x8xf32>
    %108 = arith.truncf %107 : vector<8x8x8xf32> to vector<8x8x8xbf16>
    "tpu.trace_start"() <{level = 10 : i32, message = "blm,bmd->bld"}> : () -> ()
    %cst_98 = arith.constant dense<0.000000e+00> : vector<8x8x8xf32>
    %109 = tpu.matmul %108, %96, %cst_98 {dimension_numbers = #tpu.dot_dimension_numbers<[2], [1], [1], [2], [0, 0, 0, 1, 1, 2], [0], [0]>} : vector<8x8x8xbf16>, vector<8x8x8xbf16>, vector<8x8x8xf32> -> vector<8x8x8xf32>
    "tpu.trace_stop"() : () -> ()
    %110 = arith.truncf %109 : vector<8x8x8xf32> to vector<8x8x8xbf16>
    %111 = vector.shape_cast %110 : vector<8x8x8xbf16> to vector<4x2x8x8xbf16>
    %112 = vector.extract_strided_slice %111 {offsets = [0, 0, 0, 0], sizes = [1, 2, 8, 8], strides = [1, 1, 1, 1]} : vector<4x2x8x8xbf16> to vector<1x2x8x8xbf16>
    %113 = vector.shape_cast %112 : vector<1x2x8x8xbf16> to vector<2x8x8xbf16>
    %c0_99 = arith.constant 0 : index
    %c0_100 = arith.constant 0 : index
    %c0_101 = arith.constant 0 : index
    %114 = vector.load %arg13[%c0_99, %c0_100, %c0_101] : memref<2x8x32xbf16, #tpu.memory_space<vmem>>, vector<2x8x8xbf16>
    tpu.vector_store %arg13[%c0_99, %c0_100, %c0_101], %113 {strides = array<i32>} : memref<2x8x32xbf16, #tpu.memory_space<vmem>>, vector<2x8x8xbf16>,
    %115 = vector.extract_strided_slice %111 {offsets = [1, 0, 0, 0], sizes = [1, 2, 8, 8], strides = [1, 1, 1, 1]} : vector<4x2x8x8xbf16> to vector<1x2x8x8xbf16>
    %116 = vector.shape_cast %115 : vector<1x2x8x8xbf16> to vector<2x8x8xbf16>
    %c0_102 = arith.constant 0 : index
    %c0_103 = arith.constant 0 : index
    %c8 = arith.constant 8 : index
    %117 = vector.load %arg13[%c0_102, %c0_103, %c8] : memref<2x8x32xbf16, #tpu.memory_space<vmem>>, vector<2x8x8xbf16>
    tpu.vector_store %arg13[%c0_102, %c0_103, %c8], %116 {strides = array<i32>} : memref<2x8x32xbf16, #tpu.memory_space<vmem>>, vector<2x8x8xbf16>,
    %118 = vector.extract_strided_slice %111 {offsets = [2, 0, 0, 0], sizes = [1, 2, 8, 8], strides = [1, 1, 1, 1]} : vector<4x2x8x8xbf16> to vector<1x2x8x8xbf16>
    %119 = vector.shape_cast %118 : vector<1x2x8x8xbf16> to vector<2x8x8xbf16>
    %c0_104 = arith.constant 0 : index
    %c0_105 = arith.constant 0 : index
    %c16 = arith.constant 16 : index
    %120 = vector.load %arg13[%c0_104, %c0_105, %c16] : memref<2x8x32xbf16, #tpu.memory_space<vmem>>, vector<2x8x8xbf16>
    tpu.vector_store %arg13[%c0_104, %c0_105, %c16], %119 {strides = array<i32>} : memref<2x8x32xbf16, #tpu.memory_space<vmem>>, vector<2x8x8xbf16>,
    %121 = vector.extract_strided_slice %111 {offsets = [3, 0, 0, 0], sizes = [1, 2, 8, 8], strides = [1, 1, 1, 1]} : vector<4x2x8x8xbf16> to vector<1x2x8x8xbf16>
    %122 = vector.shape_cast %121 : vector<1x2x8x8xbf16> to vector<2x8x8xbf16>
    %c0_106 = arith.constant 0 : index
    %c0_107 = arith.constant 0 : index
    %c24 = arith.constant 24 : index
    %123 = vector.load %arg13[%c0_106, %c0_107, %c24] : memref<2x8x32xbf16, #tpu.memory_space<vmem>>, vector<2x8x8xbf16>
    tpu.vector_store %arg13[%c0_106, %c0_107, %c24], %122 {strides = array<i32>} : memref<2x8x32xbf16, #tpu.memory_space<vmem>>, vector<2x8x8xbf16>,
    %c0_108 = arith.constant 0 : index
    %c0_109 = arith.constant 0 : index
    %c0_110 = arith.constant 0 : index
    %124 = vector.load %arg13[%c0_108, %c0_109, %c0_110] : memref<2x8x32xbf16, #tpu.memory_space<vmem>>, vector<2x8x32xbf16>
    %125 = vector.shape_cast %124 : vector<2x8x32xbf16> to vector<16x32xbf16>
    %c0_111 = arith.constant 0 : index
    %c0_112 = arith.constant 0 : index
    %126 = vector.load %arg5[%c0_111, %c0_112] : memref<32x32xbf16, #tpu.memory_space<vmem>>, vector<32x32xbf16>
    %cst_113 = arith.constant dense<0.000000e+00> : vector<16x32xf32>
    %127 = tpu.matmul %125, %126, %cst_113 {dimension_numbers = #tpu.dot_dimension_numbers<[1], [0], [0], [1], [0, 0, 1, 1], [], []>} : vector<16x32xbf16>, vector<32x32xbf16>, vector<16x32xf32> -> vector<16x32xf32>
    %c2_114 = arith.constant 2 : index
    %c0_115 = arith.constant 0 : index
    %128 = vector.load %arg6[%c2_114, %c0_115] : memref<8x64xf32, #tpu.memory_space<vmem>>, vector<1x32xf32>
    %129 = vector.broadcast %128 : vector<1x32xf32> to vector<16x32xf32>
    %130 = arith.addf %127, %129 : vector<16x32xf32>
    %131 = vector.shape_cast %130 : vector<16x32xf32> to vector<2x8x32xf32>
    %c3_116 = arith.constant 3 : index
    %c0_117 = arith.constant 0 : index
    %132 = vector.load %arg6[%c3_116, %c0_117] : memref<8x64xf32, #tpu.memory_space<vmem>>, vector<1x32xf32>
    %c4 = arith.constant 4 : index
    %c0_118 = arith.constant 0 : index
    %133 = vector.load %arg6[%c4, %c0_118] : memref<8x64xf32, #tpu.memory_space<vmem>>, vector<1x32xf32>
    %c0_119 = arith.constant 0 : index
    %c0_120 = arith.constant 0 : index
    %c0_121 = arith.constant 0 : index
    %134 = vector.load %arg8[%c0_119, %c0_120, %c0_121] : memref<2x8x32xf32, #tpu.memory_space<vmem>>, vector<2x8x32xf32>
    %135 = arith.addf %134, %131 : vector<2x8x32xf32>
    %cst_122 = arith.constant dense<0.000000e+00> : vector<2x8xf32>
    %136 = vector.multi_reduction <add>, %135, %cst_122 [2] : vector<2x8x32xf32> to vector<2x8xf32>
    %137 = vector.shape_cast %136 : vector<2x8xf32> to vector<2x8x1xf32>
    %cst_123 = arith.constant 3.200000e+01 : f32
    %138 = vector.broadcast %cst_123 : f32 to vector<2x8x1xf32>
    %139 = arith.divf %137, %138 : vector<2x8x1xf32>
    %140 = vector.broadcast %139 : vector<2x8x1xf32> to vector<2x8x32xf32>
    %141 = arith.subf %135, %140 : vector<2x8x32xf32>
    %142 = arith.mulf %141, %141 : vector<2x8x32xf32>
    %cst_124 = arith.constant dense<0.000000e+00> : vector<2x8xf32>
    %143 = vector.multi_reduction <add>, %142, %cst_124 [2] : vector<2x8x32xf32> to vector<2x8xf32>
    %144 = vector.shape_cast %143 : vector<2x8xf32> to vector<2x8x1xf32>
    %cst_125 = arith.constant 3.200000e+01 : f32
    %145 = vector.broadcast %cst_125 : f32 to vector<2x8x1xf32>
    %146 = arith.divf %144, %145 : vector<2x8x1xf32>
    %147 = vector.broadcast %139 : vector<2x8x1xf32> to vector<2x8x32xf32>
    %148 = arith.subf %135, %147 : vector<2x8x32xf32>
    %cst_126 = arith.constant 9.99999974E-6 : f32
    %149 = vector.broadcast %cst_126 : f32 to vector<2x8x1xf32>
    %150 = arith.addf %146, %149 : vector<2x8x1xf32>
    %151 = math.rsqrt %150 : vector<2x8x1xf32>
    %152 = vector.broadcast %151 : vector<2x8x1xf32> to vector<2x8x32xf32>
    %153 = arith.mulf %148, %152 : vector<2x8x32xf32>
    %154 = vector.shape_cast %132 : vector<1x32xf32> to vector<1x1x32xf32>
    %155 = vector.broadcast %154 : vector<1x1x32xf32> to vector<2x8x32xf32>
    %156 = arith.mulf %153, %155 : vector<2x8x32xf32>
    %157 = vector.shape_cast %133 : vector<1x32xf32> to vector<1x1x32xf32>
    %158 = vector.broadcast %157 : vector<1x1x32xf32> to vector<2x8x32xf32>
    %159 = arith.addf %156, %158 : vector<2x8x32xf32>
    %160 = vector.extract_strided_slice %159 {offsets = [0, 0, 0], sizes = [1, 8, 32], strides = [1, 1, 1]} : vector<2x8x32xf32> to vector<1x8x32xf32>
    %161 = vector.shape_cast %160 : vector<1x8x32xf32> to vector<8x32xf32>
    %c0_127 = arith.constant 0 : index
    %c0_128 = arith.constant 0 : index
    %c0_129 = arith.constant 0 : index
    %162 = vector.load %arg7[%c0_127, %c0_128, %c0_129] : memref<8x2x32xf32, #tpu.memory_space<vmem>>, vector<8x1x32xf32>
    %163 = vector.shape_cast %162 : vector<8x1x32xf32> to vector<8x32xf32>
    %164 = vector.shape_cast %161 : vector<8x32xf32> to vector<8x1x32xf32>
    tpu.vector_store %arg7[%c0_127, %c0_128, %c0_129], %164 {strides = array<i32>} : memref<8x2x32xf32, #tpu.memory_space<vmem>>, vector<8x1x32xf32>,
    %165 = vector.extract_strided_slice %159 {offsets = [1, 0, 0], sizes = [1, 8, 32], strides = [1, 1, 1]} : vector<2x8x32xf32> to vector<1x8x32xf32>
    %166 = vector.shape_cast %165 : vector<1x8x32xf32> to vector<8x32xf32>
    %c0_130 = arith.constant 0 : index
    %c1_131 = arith.constant 1 : index
    %c0_132 = arith.constant 0 : index
    %167 = vector.load %arg7[%c0_130, %c1_131, %c0_132] : memref<8x2x32xf32, #tpu.memory_space<vmem>>, vector<8x1x32xf32>
    %168 = vector.shape_cast %167 : vector<8x1x32xf32> to vector<8x32xf32>
    %169 = vector.shape_cast %166 : vector<8x32xf32> to vector<8x1x32xf32>
    tpu.vector_store %arg7[%c0_130, %c1_131, %c0_132], %169 {strides = array<i32>} : memref<8x2x32xf32, #tpu.memory_space<vmem>>, vector<8x1x32xf32>,
    return
  }
  func.func @transform_0(%arg0: i32) -> (i32, i32, i32) {
    %c0_i32 = arith.constant 0 : i32
    %c0_i32_0 = arith.constant 0 : i32
    %c0_i32_1 = arith.constant 0 : i32
    return %c0_i32, %arg0, %c0_i32_0 : i32, i32, i32
  }
  func.func @transform_1(%arg0: i32) -> (i32, i32, i32) {
    %c0_i32 = arith.constant 0 : i32
    %c0_i32_0 = arith.constant 0 : i32
    %c0_i32_1 = arith.constant 0 : i32
    return %c0_i32, %arg0, %c0_i32_0 : i32, i32, i32
  }
  func.func @transform_2(%arg0: i32) -> (i32, i32) {
    %c0_i32 = arith.constant 0 : i32
    %c0_i32_0 = arith.constant 0 : i32
    %c0_i32_1 = arith.constant 0 : i32
    return %c0_i32, %c0_i32_0 : i32, i32
  }
  func.func @transform_3(%arg0: i32) -> (i32, i32) {
    %c0_i32 = arith.constant 0 : i32
    %c0_i32_0 = arith.constant 0 : i32
    %c0_i32_1 = arith.constant 0 : i32
    return %c0_i32, %c0_i32_0 : i32, i32
  }
  func.func @transform_4(%arg0: i32) -> (i32, i32) {
    %c0_i32 = arith.constant 0 : i32
    %c0_i32_0 = arith.constant 0 : i32
    %c0_i32_1 = arith.constant 0 : i32
    return %c0_i32, %c0_i32_0 : i32, i32
  }
  func.func @transform_5(%arg0: i32) -> (i32, i32) {
    %c0_i32 = arith.constant 0 : i32
    %c0_i32_0 = arith.constant 0 : i32
    %c0_i32_1 = arith.constant 0 : i32
    return %c0_i32, %c0_i32_0 : i32, i32
  }
  func.func @transform_6(%arg0: i32) -> (i32, i32, i32) {
    %c0_i32 = arith.constant 0 : i32
    %c0_i32_0 = arith.constant 0 : i32
    %c0_i32_1 = arith.constant 0 : i32
    return %c0_i32, %arg0, %c0_i32_0 : i32, i32, i32
  }
}

</mosaic_0001>

<llo_original>
// kernel: tpu_custom_call.1
$region0: #{tpu_custom_call.1}
  #allocation0 [shape = 'u32[]', space=smem, size = 0x4, offset = 0x4, fixed_abs, tag = 'smem constant byte address 0x4 - core index']
  #allocation1 [shape = 'u32[144,128]{1,0:T(1,128)}', space=vmem, size = 0x12000, scoped, tag = 'internal scratch']
  #allocation2 [shape = 'f32[2,8,32]{2,1,0:T(8,128)}', space=vmem, size = 0x2000, scoped, tag = 'scratch operand']
  #allocation3 [shape = 'bf16[2,8,32]{2,1,0:T(8,128)(2,1)}', space=vmem, size = 0x1000, scoped, tag = 'scratch operand']
  #allocation4 [shape = 'bf16[4,2,8,8]{3,2,1,0:T(8,128)(2,1)}', space=vmem, size = 0x4000, scoped, tag = 'scratch operand']
  #allocation5 [shape = 'bf16[4,2,8,8]{3,2,1,0:T(8,128)(2,1)}', space=vmem, size = 0x4000, scoped, tag = 'scratch operand']
  #allocation6 [shape = 'bf16[4,2,8,8]{3,2,1,0:T(8,128)(2,1)}', space=vmem, size = 0x4000, scoped, tag = 'scratch operand']
  #allocation7 [shape = 'bf16[2,8,32]{2,1,0:T(8,128)(2,1)}', space=vmem, size = 0x1000, scoped, tag = 'scratch operand']
  %s0 = inlined_call_operand.hbm [shape: f32[8,2,32], index: 0, kind: input, shape index: {}]
  %s1 = inlined_call_operand.hbm [shape: f32[8,2,32], index: 1, kind: input, shape index: {}]
  %s2 = inlined_call_operand.hbm [shape: bf16[32,64], index: 2, kind: input, shape index: {}]
  %s3 = inlined_call_operand.hbm [shape: bf16[32,32], index: 3, kind: input, shape index: {}]
  %s4 = inlined_call_operand.hbm [shape: bf16[32,32], index: 4, kind: input, shape index: {}]
  %s5 = inlined_call_operand.vmem [shape: f32[8,64], index: 5, kind: input, shape index: {}]
  %s6 = inlined_call_operand.hbm [shape: f32[8,2,32], index: 6, kind: output, shape index: {}]
  %s7 = sld [smem:[#allocation0]]
  $region54: #{tpu_custom_call.1} parent=0
    _
  %s9 = ssub.s32 1, %s7
  %s10 = scalar_select 0, %s9, %s7
  $region1: #{tpu_custom_call.1} parent=0
    #allocation8 [shape = 'u8[8192]{0}', space=vmem, size = 0x2000, scoped, tag = 'input window, operand 0, single buffered']
    #allocation9 [shape = 's32[1]{0}', space=sflag, size = 0x4, scoped, tag = 'scoped memory for tpu_custom_call.1']
    #allocation10 [shape = 's32[1]{0}', space=sflag, size = 0x4, scoped, tag = 'scoped memory for tpu_custom_call.1']
    #allocation11 [shape = 'u8[8192]{0}', space=vmem, size = 0x2000, scoped, tag = 'input window, operand 1, single buffered']
    #allocation12 [shape = 's32[1]{0}', space=sflag, size = 0x4, scoped, tag = 'scoped memory for tpu_custom_call.1']
    #allocation13 [shape = 'u8[8192]{0}', space=vmem, size = 0x2000, scoped, tag = 'input window, operand 2, single buffered']
    #allocation14 [shape = 'u8[8192]{0}', space=vmem, size = 0x2000, scoped, tag = 'input window, operand 3, single buffered']
    #allocation15 [shape = 's32[1]{0}', space=sflag, size = 0x4, scoped, tag = 'scoped memory for tpu_custom_call.1']
    #allocation16 [shape = 'u8[8192]{0}', space=vmem, size = 0x2000, scoped, tag = 'input window, operand 4, single buffered']
    #allocation17 [shape = 'u8[8192]{0}', space=vmem, size = 0x2000, scoped, tag = 'output window, operand 0, single buffered']
    %11 = vsyncpa [#allocation9], 0
    %12 = vsyncpa [#allocation12], 0
    %13 = vsyncpa [#allocation15], 0
    %14 = vsyncpa [#allocation10], 0
    // Predicated region
    $region2: #{tpu_custom_call.1} parent=1 // pred_check
      _
    $region3: #{tpu_custom_call.1} parent=1 // pred_check_branch
      %16 = sbr.rel (0) target = $region5
    $region4: #{tpu_custom_call.1} parent=1 // pred_region
      %s18 = ssub.s32 256, 256
      %19 = vsyncadd [#allocation9], %s18
      %s20 = sshll.u32 [#allocation8], 4
      %s21 = int_to_ptr.vmem [resolvable:$true] %s20
      %26 = dma.hbm_to_vmem [thread:$0]  %s0, 256, %s21, [#allocation9], 32, 32, 2
    $region5: #{tpu_custom_call.1} parent=1 // pred_fallthru
      _
    // Predicated region
    $region6: #{tpu_custom_call.1} parent=1 // pred_check
      _
    $region7: #{tpu_custom_call.1} parent=1 // pred_check_branch
      %28 = sbr.rel (0) target = $region9
    $region8: #{tpu_custom_call.1} parent=1 // pred_region
      %s30 = ssub.s32 256, 256
      %31 = vsyncadd [#allocation12], %s30
      %s32 = sshll.u32 [#allocation11], 4
      %s33 = int_to_ptr.vmem [resolvable:$true] %s32
      %38 = dma.hbm_to_vmem [thread:$0]  %s1, 256, %s33, [#allocation12], 32, 32, 2
    $region9: #{tpu_custom_call.1} parent=1 // pred_fallthru
      _
    // Predicated region
    $region10: #{tpu_custom_call.1} parent=1 // pred_check
      _
    $region11: #{tpu_custom_call.1} parent=1 // pred_check_branch
      %40 = sbr.rel (0) target = $region13
    $region12: #{tpu_custom_call.1} parent=1 // pred_region
      %s42 = ssub.s32 256, 256
      %43 = vsyncadd [#allocation12], %s42
      %s44 = sshll.u32 [#allocation13], 4
      %s45 = int_to_ptr.vmem [resolvable:$true] %s44
      %50 = dma.hbm_to_vmem [thread:$0]  %s2, 256, %s45, [#allocation12], 64, 64, 4
    $region13: #{tpu_custom_call.1} parent=1 // pred_fallthru
      _
    // Predicated region
    $region14: #{tpu_custom_call.1} parent=1 // pred_check
      _
    $region15: #{tpu_custom_call.1} parent=1 // pred_check_branch
      %52 = sbr.rel (0) target = $region17
    $region16: #{tpu_custom_call.1} parent=1 // pred_region
      %s54 = ssub.s32 256, 256
      %55 = vsyncadd [#allocation15], %s54
      %s56 = sshll.u32 [#allocation14], 4
      %s57 = int_to_ptr.vmem [resolvable:$true] %s56
      %62 = dma.hbm_to_vmem [thread:$0]  %s3, 256, %s57, [#allocation15], 64, 64, 4
    $region17: #{tpu_custom_call.1} parent=1 // pred_fallthru
      _
    // Predicated region
    $region18: #{tpu_custom_call.1} parent=1 // pred_check
      _
    $region19: #{tpu_custom_call.1} parent=1 // pred_check_branch
      %64 = sbr.rel (0) target = $region21
    $region20: #{tpu_custom_call.1} parent=1 // pred_region
      %s66 = ssub.s32 256, 256
      %67 = vsyncadd [#allocation15], %s66
      %s68 = sshll.u32 [#allocation16], 4
      %s69 = int_to_ptr.vmem [resolvable:$true] %s68
      %74 = dma.hbm_to_vmem [thread:$0]  %s4, 256, %s69, [#allocation15], 64, 64, 4
    $region21: #{tpu_custom_call.1} parent=1 // pred_fallthru
      _
    // Predicated region
    $region22: #{tpu_custom_call.1} parent=1 // pred_check
      _
    $region23: #{tpu_custom_call.1} parent=1 // pred_check_branch
      %76 = sbr.rel (0) target = $region25
    $region24: #{tpu_custom_call.1} parent=1 // pred_region
      _
    $region25: #{tpu_custom_call.1} parent=1 // pred_fallthru
      _
    // Predicated region
    $region26: #{tpu_custom_call.1} parent=1 // pred_check
      _
    $region27: #{tpu_custom_call.1} parent=1 // pred_check_branch
      %78 = sbr.rel (0) target = $region29
    $region28: #{tpu_custom_call.1} parent=1 // pred_region
      %79 = dma.done [#allocation9], 256
    $region29: #{tpu_custom_call.1} parent=1 // pred_fallthru
      _
    // Predicated region
    $region30: #{tpu_custom_call.1} parent=1 // pred_check
      _
    $region31: #{tpu_custom_call.1} parent=1 // pred_check_branch
      %81 = sbr.rel (0) target = $region33
    $region32: #{tpu_custom_call.1} parent=1 // pred_region
      %82 = dma.done [#allocation12], 256
    $region33: #{tpu_custom_call.1} parent=1 // pred_fallthru
      _
    // Predicated region
    $region34: #{tpu_custom_call.1} parent=1 // pred_check
      _
    $region35: #{tpu_custom_call.1} parent=1 // pred_check_branch
      %84 = sbr.rel (0) target = $region37
    $region36: #{tpu_custom_call.1} parent=1 // pred_region
      %85 = dma.done [#allocation12], 256
    $region37: #{tpu_custom_call.1} parent=1 // pred_fallthru
      _
    // Predicated region
    $region38: #{tpu_custom_call.1} parent=1 // pred_check
      _
    $region39: #{tpu_custom_call.1} parent=1 // pred_check_branch
      %87 = sbr.rel (0) target = $region41
    $region40: #{tpu_custom_call.1} parent=1 // pred_region
      %88 = dma.done [#allocation15], 256
    $region41: #{tpu_custom_call.1} parent=1 // pred_fallthru
      _
    // Predicated region
    $region42: #{tpu_custom_call.1} parent=1 // pred_check
      _
    $region43: #{tpu_custom_call.1} parent=1 // pred_check_branch
      %90 = sbr.rel (0) target = $region45
    $region44: #{tpu_custom_call.1} parent=1 // pred_region
      %91 = dma.done [#allocation15], 256
    $region45: #{tpu_custom_call.1} parent=1 // pred_fallthru
      _
    %v93 = vld [vmem:[#allocation8] sm:$0x1]
    %v94 = vld [vmem:[#allocation8 + $0x2] sm:$0x1]
    %v95 = vld [vmem:[#allocation8 + $0x4] sm:$0x1]
    %v96 = vld [vmem:[#allocation8 + $0x6] sm:$0x1]
    %v97 = vld [vmem:[#allocation8 + $0x8] sm:$0x1]
    %v98 = vld [vmem:[#allocation8 + $0xa] sm:$0x1]
    %v99 = vld [vmem:[#allocation8 + $0xc] sm:$0x1]
    %v100 = vld [vmem:[#allocation8 + $0xe] sm:$0x1]
    %v109 = vrot.slane %v94, 7
    %vm110 = vcmask 1041409
    %v111 = vsel %vm110, %v109, %v93
    %v112 = vrot.slane %v95, 6
    %vm113 = vcmask 1042434
    %v114 = vsel %vm113, %v112, %v111
    %v115 = vrot.slane %v96, 5
    %vm116 = vcmask 1043459
    %v117 = vsel %vm116, %v115, %v114
    %v118 = vrot.slane %v97, 4
    %vm119 = vcmask 1044484
    %v120 = vsel %vm119, %v118, %v117
    %v121 = vrot.slane %v98, 3
    %vm122 = vcmask 1045509
    %v123 = vsel %vm122, %v121, %v120
    %v124 = vrot.slane %v99, 2
    %vm125 = vcmask 1046534
    %v126 = vsel %vm125, %v124, %v123
    %v127 = vrot.slane %v100, 1
    %vm128 = vcmask 1047559
    %v129 = vsel %vm128, %v127, %v126
    %vm131 = vcmask 261120
    %132 = vst.msk [vmem:[#allocation2] sm:$0xff] %vm131, %v129
    %v133 = vld [vmem:[#allocation11] sm:$0x1]
    %v134 = vld [vmem:[#allocation11 + $0x2] sm:$0x1]
    %v135 = vld [vmem:[#allocation11 + $0x4] sm:$0x1]
    %v136 = vld [vmem:[#allocation11 + $0x6] sm:$0x1]
    %v137 = vld [vmem:[#allocation11 + $0x8] sm:$0x1]
    %v138 = vld [vmem:[#allocation11 + $0xa] sm:$0x1]
    %v139 = vld [vmem:[#allocation11 + $0xc] sm:$0x1]
    %v140 = vld [vmem:[#allocation11 + $0xe] sm:$0x1]
    %v141 = vadd.f32 %v93, %v133
    %v142 = vadd.f32 %v94, %v134
    %v143 = vadd.f32 %v95, %v135
    %v144 = vadd.f32 %v96, %v136
    %v145 = vadd.f32 %v97, %v137
    %v146 = vadd.f32 %v98, %v138
    %v147 = vadd.f32 %v99, %v139
    %v148 = vadd.f32 %v100, %v140
    %v149 = vpack.c.bf16 %v141, %v141
    %v150 = vpack.c.bf16 %v142, %v142
    %v151 = vpack.c.bf16 %v143, %v143
    %v152 = vpack.c.bf16 %v144, %v144
    %v153 = vpack.c.bf16 %v145, %v145
    %v154 = vpack.c.bf16 %v146, %v146
    %v155 = vpack.c.bf16 %v147, %v147
    %v156 = vpack.c.bf16 %v148, %v148
    %v165 = vunpack.c.l.b16 %v149
    %v166 = vunpack.c.l.b16 %v150
    %v167 = vunpack.c.l.b16 %v151
    %v168 = vunpack.c.l.b16 %v152
    %v169 = vunpack.c.l.b16 %v153
    %v170 = vunpack.c.l.b16 %v154
    %v171 = vunpack.c.l.b16 %v155
    %v172 = vunpack.c.l.b16 %v156
    %v173 = vpack.c.b16 %v165, %v165
    %v174 = vpack.c.b16 %v166, %v166
    %v175 = vpack.c.b16 %v167, %v167
    %v176 = vpack.c.b16 %v168, %v168
    %v177 = vpack.c.b16 %v169, %v169
    %v178 = vpack.c.b16 %v170, %v170
    %v179 = vpack.c.b16 %v171, %v171
    %v180 = vpack.c.b16 %v172, %v172
    %v181 = vunpack.c.l.b16 %v173
    %v182 = vunpack.c.l.b16 %v174
    %v183 = vunpack.c.l.b16 %v175
    %v184 = vunpack.c.l.b16 %v176
    %v185 = vunpack.c.l.b16 %v177
    %v186 = vunpack.c.l.b16 %v178
    %v187 = vunpack.c.l.b16 %v179
    %v188 = vunpack.c.l.b16 %v180
    %v189 = vrot.slane %v182, 7
    %v190 = vsel %vm110, %v189, %v181
    %v191 = vrot.slane %v183, 6
    %v192 = vsel %vm113, %v191, %v190
    %v193 = vrot.slane %v184, 5
    %v194 = vsel %vm116, %v193, %v192
    %v195 = vrot.slane %v185, 4
    %v196 = vsel %vm119, %v195, %v194
    %v197 = vrot.slane %v186, 3
    %v198 = vsel %vm122, %v197, %v196
    %v199 = vrot.slane %v187, 2
    %v200 = vsel %vm125, %v199, %v198
    %v201 = vrot.slane %v188, 1
    %v202 = vsel %vm128, %v201, %v200
    %v203 = vpack.c.b16 %v202, %v202
    %vm205 = vcmask 257024
    %206 = vst.msk [vmem:[#allocation3] sm:$0xf] %vm205, %v203
    %v207 = vld [vmem:[#allocation8 + $0x1] sm:$0x1]
    %v208 = vld [vmem:[#allocation8 + $0x3] sm:$0x1]
    %v209 = vld [vmem:[#allocation8 + $0x5] sm:$0x1]
    %v210 = vld [vmem:[#allocation8 + $0x7] sm:$0x1]
    %v211 = vld [vmem:[#allocation8 + $0x9] sm:$0x1]
    %v212 = vld [vmem:[#allocation8 + $0xb] sm:$0x1]
    %v213 = vld [vmem:[#allocation8 + $0xd] sm:$0x1]
    %v214 = vld [vmem:[#allocation8 + $0xf] sm:$0x1]
    %v223 = vrot.slane %v208, 7
    %v224 = vsel %vm110, %v223, %v207
    %v225 = vrot.slane %v209, 6
    %v226 = vsel %vm113, %v225, %v224
    %v227 = vrot.slane %v210, 5
    %v228 = vsel %vm116, %v227, %v226
    %v229 = vrot.slane %v211, 4
    %v230 = vsel %vm119, %v229, %v228
    %v231 = vrot.slane %v212, 3
    %v232 = vsel %vm122, %v231, %v230
    %v233 = vrot.slane %v213, 2
    %v234 = vsel %vm125, %v233, %v232
    %v235 = vrot.slane %v214, 1
    %v236 = vsel %vm128, %v235, %v234
    %s238 = scalar_lea.vmem [#allocation2], 8
    %239 = vst.msk [vmem:[%s238] sm:$0xff] %vm131, %v236
    %v240 = vld [vmem:[#allocation11 + $0x1] sm:$0x1]
    %v241 = vld [vmem:[#allocation11 + $0x3] sm:$0x1]
    %v242 = vld [vmem:[#allocation11 + $0x5] sm:$0x1]
    %v243 = vld [vmem:[#allocation11 + $0x7] sm:$0x1]
    %v244 = vld [vmem:[#allocation11 + $0x9] sm:$0x1]
    %v245 = vld [vmem:[#allocation11 + $0xb] sm:$0x1]
    %v246 = vld [vmem:[#allocation11 + $0xd] sm:$0x1]
    %v247 = vld [vmem:[#allocation11 + $0xf] sm:$0x1]
    %v248 = vadd.f32 %v207, %v240
    %v249 = vadd.f32 %v208, %v241
    %v250 = vadd.f32 %v209, %v242
    %v251 = vadd.f32 %v210, %v243
    %v252 = vadd.f32 %v211, %v244
    %v253 = vadd.f32 %v212, %v245
    %v254 = vadd.f32 %v213, %v246
    %v255 = vadd.f32 %v214, %v247
    %v256 = vpack.c.bf16 %v248, %v248
    %v257 = vpack.c.bf16 %v249, %v249
    %v258 = vpack.c.bf16 %v250, %v250
    %v259 = vpack.c.bf16 %v251, %v251
    %v260 = vpack.c.bf16 %v252, %v252
    %v261 = vpack.c.bf16 %v253, %v253
    %v262 = vpack.c.bf16 %v254, %v254
    %v263 = vpack.c.bf16 %v255, %v255
    %v272 = vunpack.c.l.b16 %v256
    %v273 = vunpack.c.l.b16 %v257
    %v274 = vunpack.c.l.b16 %v258
    %v275 = vunpack.c.l.b16 %v259
    %v276 = vunpack.c.l.b16 %v260
    %v277 = vunpack.c.l.b16 %v261
    %v278 = vunpack.c.l.b16 %v262
    %v279 = vunpack.c.l.b16 %v263
    %v280 = vpack.c.b16 %v272, %v272
    %v281 = vpack.c.b16 %v273, %v273
    %v282 = vpack.c.b16 %v274, %v274
    %v283 = vpack.c.b16 %v275, %v275
    %v284 = vpack.c.b16 %v276, %v276
    %v285 = vpack.c.b16 %v277, %v277
    %v286 = vpack.c.b16 %v278, %v278
    %v287 = vpack.c.b16 %v279, %v279
    %v288 = vunpack.c.l.b16 %v280
    %v289 = vunpack.c.l.b16 %v281
    %v290 = vunpack.c.l.b16 %v282
    %v291 = vunpack.c.l.b16 %v283
    %v292 = vunpack.c.l.b16 %v284
    %v293 = vunpack.c.l.b16 %v285
    %v294 = vunpack.c.l.b16 %v286
    %v295 = vunpack.c.l.b16 %v287
    %v296 = vrot.slane %v289, 7
    %v297 = vsel %vm110, %v296, %v288
    %v298 = vrot.slane %v290, 6
    %v299 = vsel %vm113, %v298, %v297
    %v300 = vrot.slane %v291, 5
    %v301 = vsel %vm116, %v300, %v299
    %v302 = vrot.slane %v292, 4
    %v303 = vsel %vm119, %v302, %v301
    %v304 = vrot.slane %v293, 3
    %v305 = vsel %vm122, %v304, %v303
    %v306 = vrot.slane %v294, 2
    %v307 = vsel %vm125, %v306, %v305
    %v308 = vrot.slane %v295, 1
    %v309 = vsel %vm128, %v308, %v307
    %v310 = vpack.c.b16 %v309, %v309
    %s312 = scalar_lea.vmem [#allocation3], 4
    %313 = vst.msk [vmem:[%s312] sm:$0xf] %vm205, %v310
    %v314 = vld [vmem:[#allocation3] sm:$0xf]
    %v315 = vld [vmem:[#allocation3 + $0x4] sm:$0xf]
    %v316 = vld [vmem:[#allocation2] sm:$0xff]
    %v317 = vld [vmem:[#allocation2 + $0x8] sm:$0xff]
    %v318 = vpack.c.bf16 %v316, %v316
    %v319 = vpack.c.bf16 %v317, %v317
    %v320 = vld [vmem:[#allocation13] sm:$0xf]
    %v321 = vld [vmem:[#allocation13 + $0x4] sm:$0xf]
    %v322 = vld [vmem:[#allocation13 + $0x8] sm:$0xf]
    %v323 = vld [vmem:[#allocation13 + $0xc] sm:$0xf]
    %v324 = vld [vmem:[%s5] sm:$0x1]
    %v325 = vlaneseq
    %v326 = vshrl.u32 %v325, 7
    %v327 = vsub.s32 0, %v326
    %v328 = vrot.slane %v324, %v327
    %v331 = vunpack.c.l.b16 %v314
    %v332 = vunpack.c.l.b16 %v315
    %v333 = vpack.c.b16 %v332, %v331
    %v338 = vunpack.c.l.b16 %v320
    %v339 = vunpack.c.l.b16 %v321
    %v340 = vunpack.c.l.b16 %v322
    %v341 = vunpack.c.l.b16 %v323
    %v342 = vpack.c.b16 %v339, %v338
    %v343 = vpack.c.b16 %v341, %v340
    %v347 = vsel %vm131, %v333, 0
    %349 = vmatprep.subr.bf16.mxu0 0
    %350 = vmatpush1.bf16.msra.mxu0 %v342
    %351 = vmatprep.subr.bf16.mxu0 0
    %352 = vmatpush1.bf16.msra.mxu0 %v343
    %353 = vmatprep.subr.bf16.mxu0 0
    %354 = vmatpush1.bf16.msra.mxu0 0
    %355 = vmatprep.subr.bf16.mxu0 0
    %356 = vmatpush1.bf16.msra.mxu0 0
    %357 = vmatprep.subr.bf16.mxu0 0
    %358 = vmatpush1.bf16.msra.mxu0 0
    %359 = vmatprep.subr.bf16.mxu0 0
    %360 = vmatpush1.bf16.msra.mxu0 0
    %361 = vmatprep.subr.bf16.mxu0 0
    %362 = vmatpush1.bf16.msra.mxu0 0
    %363 = vmatprep.subr.bf16.mxu0 0
    %364 = vmatpush1.bf16.msra.mxu0 0
    %365 = vmatprep.subr.bf16.mxu0 0
    %366 = vmatpush1.bf16.msra.mxu0 0
    %367 = vmatprep.subr.bf16.mxu0 0
    %368 = vmatpush1.bf16.msra.mxu0 0
    %369 = vmatprep.subr.bf16.mxu0 0
    %370 = vmatpush1.bf16.msra.mxu0 0
    %371 = vmatprep.subr.bf16.mxu0 0
    %372 = vmatpush1.bf16.msra.mxu0 0
    %373 = vmatprep.subr.bf16.mxu0 0
    %374 = vmatpush1.bf16.msra.mxu0 0
    %375 = vmatprep.subr.bf16.mxu0 0
    %376 = vmatpush1.bf16.msra.mxu0 0
    %377 = vmatprep.subr.bf16.mxu0 0
    %378 = vmatpush1.bf16.msra.mxu0 0
    %379 = vmatprep.subr.bf16.mxu0 0
    %380 = vmatpush1.bf16.msra.mxu0 0
    %381 = vmatprep.mubr.bf16.mxu0 0
    %382 = vmatmul.mubr.bf16.gmra.mrb[0].mxu0 %v347
    %v383 = vpop.f32.mrb[0].mxu0
    %v384 = vadd.f32 %v328, %v383
    %v385 = vpop.f32.mrb[0].mxu0
    %v386 = vpop.f32.mrb[0].mxu0
    %v387 = vadd.f32 %v328, %v386
    %v388 = vpop.f32.mrb[0].mxu0
    %389 = vdwg.mxu0
    %v390 = vld [vmem:[#allocation14] sm:$0xf]
    %v391 = vld [vmem:[#allocation14 + $0x4] sm:$0xf]
    %v392 = vld [vmem:[#allocation14 + $0x8] sm:$0xf]
    %v393 = vld [vmem:[#allocation14 + $0xc] sm:$0xf]
    %v394 = vld [vmem:[%s5 + $0x1] sm:$0x1]
    %v395 = vlaneseq
    %v396 = vshrl.u32 %v395, 7
    %v397 = vsub.s32 0, %v396
    %v398 = vrot.slane %v394, %v397
    %v401 = vunpack.c.l.b16 %v318
    %v402 = vunpack.c.l.b16 %v319
    %v403 = vpack.c.b16 %v402, %v401
    %v408 = vunpack.c.l.b16 %v390
    %v409 = vunpack.c.l.b16 %v391
    %v410 = vunpack.c.l.b16 %v392
    %v411 = vunpack.c.l.b16 %v393
    %v412 = vpack.c.b16 %v409, %v408
    %v413 = vpack.c.b16 %v411, %v410
    %v417 = vsel %vm131, %v403, 0
    %419 = vmatprep.subr.bf16.mxu0 0
    %420 = vmatpush1.bf16.msra.mxu0 %v412
    %421 = vmatprep.subr.bf16.mxu0 0
    %422 = vmatpush1.bf16.msra.mxu0 %v413
    %423 = vmatprep.subr.bf16.mxu0 0
    %424 = vmatpush1.bf16.msra.mxu0 0
    %425 = vmatprep.subr.bf16.mxu0 0
    %426 = vmatpush1.bf16.msra.mxu0 0
    %427 = vmatprep.subr.bf16.mxu0 0
    %428 = vmatpush1.bf16.msra.mxu0 0
    %429 = vmatprep.subr.bf16.mxu0 0
    %430 = vmatpush1.bf16.msra.mxu0 0
    %431 = vmatprep.subr.bf16.mxu0 0
    %432 = vmatpush1.bf16.msra.mxu0 0
    %433 = vmatprep.subr.bf16.mxu0 0
    %434 = vmatpush1.bf16.msra.mxu0 0
    %435 = vmatprep.subr.bf16.mxu0 0
    %436 = vmatpush1.bf16.msra.mxu0 0
    %437 = vmatprep.subr.bf16.mxu0 0
    %438 = vmatpush1.bf16.msra.mxu0 0
    %439 = vmatprep.subr.bf16.mxu0 0
    %440 = vmatpush1.bf16.msra.mxu0 0
    %441 = vmatprep.subr.bf16.mxu0 0
    %442 = vmatpush1.bf16.msra.mxu0 0
    %443 = vmatprep.subr.bf16.mxu0 0
    %444 = vmatpush1.bf16.msra.mxu0 0
    %445 = vmatprep.subr.bf16.mxu0 0
    %446 = vmatpush1.bf16.msra.mxu0 0
    %447 = vmatprep.subr.bf16.mxu0 0
    %448 = vmatpush1.bf16.msra.mxu0 0
    %449 = vmatprep.subr.bf16.mxu0 0
    %450 = vmatpush1.bf16.msra.mxu0 0
    %451 = vmatprep.mubr.bf16.mxu0 0
    %452 = vmatmul.mubr.bf16.gmra.mrb[0].mxu0 %v417
    %v453 = vpop.f32.mrb[0].mxu0
    %v454 = vadd.f32 %v398, %v453
    %v455 = vpop.f32.mrb[0].mxu0
    %v456 = vpop.f32.mrb[0].mxu0
    %v457 = vadd.f32 %v398, %v456
    %v458 = vpop.f32.mrb[0].mxu0
    %459 = vdwg.mxu0
    %v460 = vpack.c.bf16 %v387, %v384
    %v462 = vunpack.c.l.b16 %v460
    %v463 = vunpack.c.h.b16 %v460
    %v464 = vpack.c.b16 %v462, %v462
    %v465 = vpack.c.b16 %v463, %v463
    %v468 = vpack.c.bf16 %v457, %v454
    %v470 = vunpack.c.l.b16 %v468
    %v471 = vunpack.c.h.b16 %v468
    %v472 = vpack.c.b16 %v470, %v470
    %v473 = vpack.c.b16 %v471, %v471
    %vm476 = vcmask 60416
    %477 = vst.msk [vmem:[#allocation4] sm:$0xf] %vm476, %v464
    %478 = vst.msk [vmem:[#allocation4 + $0x4] sm:$0xf] %vm476, %v465
    %479 = vrot.lane.b32.xlu0 %v464, 96
    %v480 = vpop.permute.xlu0 %479
    %481 = vrot.lane.b32.xlu0 %v465, 96
    %v482 = vpop.permute.xlu0 %481
    %485 = vst.msk [vmem:[#allocation5] sm:$0xf] %vm476, %v480
    %486 = vst.msk [vmem:[#allocation5 + $0x4] sm:$0xf] %vm476, %v482
    %487 = vst.msk [vmem:[#allocation6] sm:$0xf] %vm476, %v472
    %488 = vst.msk [vmem:[#allocation6 + $0x4] sm:$0xf] %vm476, %v473
    %489 = vrot.lane.b32.xlu0 %v464, 120
    %v490 = vpop.permute.xlu0 %489
    %491 = vrot.lane.b32.xlu0 %v465, 120
    %v492 = vpop.permute.xlu0 %491
    %s495 = scalar_lea.vmem [#allocation4], 8
    %496 = vst.msk [vmem:[%s495] sm:$0xf] %vm476, %v490
    %497 = vst.msk [vmem:[%s495 + $0x4] sm:$0xf] %vm476, %v492
    %498 = vrot.lane.b32.xlu0 %v464, 88
    %v499 = vpop.permute.xlu0 %498
    %500 = vrot.lane.b32.xlu0 %v465, 88
    %v501 = vpop.permute.xlu0 %500
    %s504 = scalar_lea.vmem [#allocation5], 8
    %505 = vst.msk [vmem:[%s504] sm:$0xf] %vm476, %v499
    %506 = vst.msk [vmem:[%s504 + $0x4] sm:$0xf] %vm476, %v501
    %507 = vrot.lane.b32.xlu0 %v472, 120
    %v508 = vpop.permute.xlu0 %507
    %509 = vrot.lane.b32.xlu0 %v473, 120
    %v510 = vpop.permute.xlu0 %509
    %s513 = scalar_lea.vmem [#allocation6], 8
    %514 = vst.msk [vmem:[%s513] sm:$0xf] %vm476, %v508
    %515 = vst.msk [vmem:[%s513 + $0x4] sm:$0xf] %vm476, %v510
    %516 = vrot.lane.b32.xlu0 %v464, 112
    %v517 = vpop.permute.xlu0 %516
    %518 = vrot.lane.b32.xlu0 %v465, 112
    %v519 = vpop.permute.xlu0 %518
    %s522 = scalar_lea.vmem [#allocation4], 16
    %523 = vst.msk [vmem:[%s522] sm:$0xf] %vm476, %v517
    %524 = vst.msk [vmem:[%s522 + $0x4] sm:$0xf] %vm476, %v519
    %525 = vrot.lane.b32.xlu0 %v464, 80
    %v526 = vpop.permute.xlu0 %525
    %527 = vrot.lane.b32.xlu0 %v465, 80
    %v528 = vpop.permute.xlu0 %527
    %s531 = scalar_lea.vmem [#allocation5], 16
    %532 = vst.msk [vmem:[%s531] sm:$0xf] %vm476, %v526
    %533 = vst.msk [vmem:[%s531 + $0x4] sm:$0xf] %vm476, %v528
    %534 = vrot.lane.b32.xlu0 %v472, 112
    %v535 = vpop.permute.xlu0 %534
    %536 = vrot.lane.b32.xlu0 %v473, 112
    %v537 = vpop.permute.xlu0 %536
    %s540 = scalar_lea.vmem [#allocation6], 16
    %541 = vst.msk [vmem:[%s540] sm:$0xf] %vm476, %v535
    %542 = vst.msk [vmem:[%s540 + $0x4] sm:$0xf] %vm476, %v537
    %543 = vrot.lane.b32.xlu0 %v464, 104
    %v544 = vpop.permute.xlu0 %543
    %545 = vrot.lane.b32.xlu0 %v465, 104
    %v546 = vpop.permute.xlu0 %545
    %s549 = scalar_lea.vmem [#allocation4], 24
    %550 = vst.msk [vmem:[%s549] sm:$0xf] %vm476, %v544
    %551 = vst.msk [vmem:[%s549 + $0x4] sm:$0xf] %vm476, %v546
    %552 = vrot.lane.b32.xlu0 %v464, 72
    %v553 = vpop.permute.xlu0 %552
    %554 = vrot.lane.b32.xlu0 %v465, 72
    %v555 = vpop.permute.xlu0 %554
    %s558 = scalar_lea.vmem [#allocation5], 24
    %559 = vst.msk [vmem:[%s558] sm:$0xf] %vm476, %v553
    %560 = vst.msk [vmem:[%s558 + $0x4] sm:$0xf] %vm476, %v555
    %561 = vrot.lane.b32.xlu0 %v472, 104
    %v562 = vpop.permute.xlu0 %561
    %563 = vrot.lane.b32.xlu0 %v473, 104
    %v564 = vpop.permute.xlu0 %563
    %s567 = scalar_lea.vmem [#allocation6], 24
    %568 = vst.msk [vmem:[%s567] sm:$0xf] %vm476, %v562
    %569 = vst.msk [vmem:[%s567 + $0x4] sm:$0xf] %vm476, %v564
    %v570 = vld [vmem:[#allocation4] sm:$0xf]
    %v571 = vld [vmem:[#allocation4 + $0x4] sm:$0xf]
    %v572 = vld [vmem:[#allocation4 + $0x8] sm:$0xf]
    %v573 = vld [vmem:[#allocation4 + $0xc] sm:$0xf]
    %v574 = vld [vmem:[#allocation4 + $0x10] sm:$0xf]
    %v575 = vld [vmem:[#allocation4 + $0x14] sm:$0xf]
    %v576 = vld [vmem:[#allocation4 + $0x18] sm:$0xf]
    %v577 = vld [vmem:[#allocation4 + $0x1c] sm:$0xf]
    %v578 = vld [vmem:[#allocation5] sm:$0xf]
    %v579 = vld [vmem:[#allocation5 + $0x4] sm:$0xf]
    %v580 = vld [vmem:[#allocation5 + $0x8] sm:$0xf]
    %v581 = vld [vmem:[#allocation5 + $0xc] sm:$0xf]
    %v582 = vld [vmem:[#allocation5 + $0x10] sm:$0xf]
    %v583 = vld [vmem:[#allocation5 + $0x14] sm:$0xf]
    %v584 = vld [vmem:[#allocation5 + $0x18] sm:$0xf]
    %v585 = vld [vmem:[#allocation5 + $0x1c] sm:$0xf]
    %v586 = vld [vmem:[#allocation6] sm:$0xf]
    %v587 = vld [vmem:[#allocation6 + $0x4] sm:$0xf]
    %v588 = vld [vmem:[#allocation6 + $0x8] sm:$0xf]
    %v589 = vld [vmem:[#allocation6 + $0xc] sm:$0xf]
    %v590 = vld [vmem:[#allocation6 + $0x10] sm:$0xf]
    %v591 = vld [vmem:[#allocation6 + $0x14] sm:$0xf]
    %v592 = vld [vmem:[#allocation6 + $0x18] sm:$0xf]
    %v593 = vld [vmem:[#allocation6 + $0x1c] sm:$0xf]
    %vm594 = vcmask 64512
    %v596 = vsel %vm594, %v570, 0
    %v599 = vsel %vm594, %v578, 0
    %601 = vmatprep.subr.bf16.mxu0 0
    %602 = vmatpush1.bf16.xpose.msra.mxu0 %v599
    %603 = vmatprep.subr.bf16.mxu0 0
    %604 = vmatpush1.bf16.xpose.msra.mxu0 0
    %605 = vmatprep.subr.bf16.mxu0 0
    %606 = vmatpush1.bf16.xpose.msra.mxu0 0
    %607 = vmatprep.subr.bf16.mxu0 0
    %608 = vmatpush1.bf16.xpose.msra.mxu0 0
    %609 = vmatprep.subr.bf16.mxu0 0
    %610 = vmatpush1.bf16.xpose.msra.mxu0 0
    %611 = vmatprep.subr.bf16.mxu0 0
    %612 = vmatpush1.bf16.xpose.msra.mxu0 0
    %613 = vmatprep.subr.bf16.mxu0 0
    %614 = vmatpush1.bf16.xpose.msra.mxu0 0
    %615 = vmatprep.subr.bf16.mxu0 0
    %616 = vmatpush1.bf16.xpose.msra.mxu0 0
    %617 = vmatprep.subr.bf16.mxu0 0
    %618 = vmatpush1.bf16.xpose.msra.mxu0 0
    %619 = vmatprep.subr.bf16.mxu0 0
    %620 = vmatpush1.bf16.xpose.msra.mxu0 0
    %621 = vmatprep.subr.bf16.mxu0 0
    %622 = vmatpush1.bf16.xpose.msra.mxu0 0
    %623 = vmatprep.subr.bf16.mxu0 0
    %624 = vmatpush1.bf16.xpose.msra.mxu0 0
    %625 = vmatprep.subr.bf16.mxu0 0
    %626 = vmatpush1.bf16.xpose.msra.mxu0 0
    %627 = vmatprep.subr.bf16.mxu0 0
    %628 = vmatpush1.bf16.xpose.msra.mxu0 0
    %629 = vmatprep.subr.bf16.mxu0 0
    %630 = vmatpush1.bf16.xpose.msra.mxu0 0
    %631 = vmatprep.subr.bf16.mxu0 0
    %632 = vmatpush1.bf16.xpose.msra.mxu0 0
    %633 = vmatprep.mubr.bf16.mxu0 0
    %634 = vmatmul.mubr.bf16.gmra.mrb[0].mxu0 %v596
    %v635 = vpop.f32.mrb[0].mxu0
    %v636 = vadd.f32 0.0, %v635
    %v637 = vpop.f32.mrb[0].mxu0
    %v638 = vpop.f32.mrb[0].mxu0
    %v639 = vpop.f32.mrb[0].mxu0
    %640 = vdwg.mxu0
    %v642 = vsel %vm594, %v571, 0
    %v645 = vsel %vm594, %v579, 0
    %647 = vmatprep.subr.bf16.mxu0 0
    %648 = vmatpush1.bf16.xpose.msra.mxu0 %v645
    %649 = vmatprep.subr.bf16.mxu0 0
    %650 = vmatpush1.bf16.xpose.msra.mxu0 0
    %651 = vmatprep.subr.bf16.mxu0 0
    %652 = vmatpush1.bf16.xpose.msra.mxu0 0
    %653 = vmatprep.subr.bf16.mxu0 0
    %654 = vmatpush1.bf16.xpose.msra.mxu0 0
    %655 = vmatprep.subr.bf16.mxu0 0
    %656 = vmatpush1.bf16.xpose.msra.mxu0 0
    %657 = vmatprep.subr.bf16.mxu0 0
    %658 = vmatpush1.bf16.xpose.msra.mxu0 0
    %659 = vmatprep.subr.bf16.mxu0 0
    %660 = vmatpush1.bf16.xpose.msra.mxu0 0
    %661 = vmatprep.subr.bf16.mxu0 0
    %662 = vmatpush1.bf16.xpose.msra.mxu0 0
    %663 = vmatprep.subr.bf16.mxu0 0
    %664 = vmatpush1.bf16.xpose.msra.mxu0 0
    %665 = vmatprep.subr.bf16.mxu0 0
    %666 = vmatpush1.bf16.xpose.msra.mxu0 0
    %667 = vmatprep.subr.bf16.mxu0 0
    %668 = vmatpush1.bf16.xpose.msra.mxu0 0
    %669 = vmatprep.subr.bf16.mxu0 0
    %670 = vmatpush1.bf16.xpose.msra.mxu0 0
    %671 = vmatprep.subr.bf16.mxu0 0
    %672 = vmatpush1.bf16.xpose.msra.mxu0 0
    %673 = vmatprep.subr.bf16.mxu0 0
    %674 = vmatpush1.bf16.xpose.msra.mxu0 0
    %675 = vmatprep.subr.bf16.mxu0 0
    %676 = vmatpush1.bf16.xpose.msra.mxu0 0
    %677 = vmatprep.subr.bf16.mxu0 0
    %678 = vmatpush1.bf16.xpose.msra.mxu0 0
    %679 = vmatprep.mubr.bf16.mxu0 0
    %680 = vmatmul.mubr.bf16.gmra.mrb[0].mxu0 %v642
    %v681 = vpop.f32.mrb[0].mxu0
    %v682 = vadd.f32 0.0, %v681
    %v683 = vpop.f32.mrb[0].mxu0
    %v684 = vpop.f32.mrb[0].mxu0
    %v685 = vpop.f32.mrb[0].mxu0
    %686 = vdwg.mxu0
    %v688 = vsel %vm594, %v572, 0
    %v691 = vsel %vm594, %v580, 0
    %693 = vmatprep.subr.bf16.mxu0 0
    %694 = vmatpush1.bf16.xpose.msra.mxu0 %v691
    %695 = vmatprep.subr.bf16.mxu0 0
    %696 = vmatpush1.bf16.xpose.msra.mxu0 0
    %697 = vmatprep.subr.bf16.mxu0 0
    %698 = vmatpush1.bf16.xpose.msra.mxu0 0
    %699 = vmatprep.subr.bf16.mxu0 0
    %700 = vmatpush1.bf16.xpose.msra.mxu0 0
    %701 = vmatprep.subr.bf16.mxu0 0
    %702 = vmatpush1.bf16.xpose.msra.mxu0 0
    %703 = vmatprep.subr.bf16.mxu0 0
    %704 = vmatpush1.bf16.xpose.msra.mxu0 0
    %705 = vmatprep.subr.bf16.mxu0 0
    %706 = vmatpush1.bf16.xpose.msra.mxu0 0
    %707 = vmatprep.subr.bf16.mxu0 0
    %708 = vmatpush1.bf16.xpose.msra.mxu0 0
    %709 = vmatprep.subr.bf16.mxu0 0
    %710 = vmatpush1.bf16.xpose.msra.mxu0 0
    %711 = vmatprep.subr.bf16.mxu0 0
    %712 = vmatpush1.bf16.xpose.msra.mxu0 0
    %713 = vmatprep.subr.bf16.mxu0 0
    %714 = vmatpush1.bf16.xpose.msra.mxu0 0
    %715 = vmatprep.subr.bf16.mxu0 0
    %716 = vmatpush1.bf16.xpose.msra.mxu0 0
    %717 = vmatprep.subr.bf16.mxu0 0
    %718 = vmatpush1.bf16.xpose.msra.mxu0 0
    %719 = vmatprep.subr.bf16.mxu0 0
    %720 = vmatpush1.bf16.xpose.msra.mxu0 0
    %721 = vmatprep.subr.bf16.mxu0 0
    %722 = vmatpush1.bf16.xpose.msra.mxu0 0
    %723 = vmatprep.subr.bf16.mxu0 0
    %724 = vmatpush1.bf16.xpose.msra.mxu0 0
    %725 = vmatprep.mubr.bf16.mxu0 0
    %726 = vmatmul.mubr.bf16.gmra.mrb[0].mxu0 %v688
    %v727 = vpop.f32.mrb[0].mxu0
    %v728 = vadd.f32 0.0, %v727
    %v729 = vpop.f32.mrb[0].mxu0
    %v730 = vpop.f32.mrb[0].mxu0
    %v731 = vpop.f32.mrb[0].mxu0
    %732 = vdwg.mxu0
    %v734 = vsel %vm594, %v573, 0
    %v737 = vsel %vm594, %v581, 0
    %739 = vmatprep.subr.bf16.mxu0 0
    %740 = vmatpush1.bf16.xpose.msra.mxu0 %v737
    %741 = vmatprep.subr.bf16.mxu0 0
    %742 = vmatpush1.bf16.xpose.msra.mxu0 0
    %743 = vmatprep.subr.bf16.mxu0 0
    %744 = vmatpush1.bf16.xpose.msra.mxu0 0
    %745 = vmatprep.subr.bf16.mxu0 0
    %746 = vmatpush1.bf16.xpose.msra.mxu0 0
    %747 = vmatprep.subr.bf16.mxu0 0
    %748 = vmatpush1.bf16.xpose.msra.mxu0 0
    %749 = vmatprep.subr.bf16.mxu0 0
    %750 = vmatpush1.bf16.xpose.msra.mxu0 0
    %751 = vmatprep.subr.bf16.mxu0 0
    %752 = vmatpush1.bf16.xpose.msra.mxu0 0
    %753 = vmatprep.subr.bf16.mxu0 0
    %754 = vmatpush1.bf16.xpose.msra.mxu0 0
    %755 = vmatprep.subr.bf16.mxu0 0
    %756 = vmatpush1.bf16.xpose.msra.mxu0 0
    %757 = vmatprep.subr.bf16.mxu0 0
    %758 = vmatpush1.bf16.xpose.msra.mxu0 0
    %759 = vmatprep.subr.bf16.mxu0 0
    %760 = vmatpush1.bf16.xpose.msra.mxu0 0
    %761 = vmatprep.subr.bf16.mxu0 0
    %762 = vmatpush1.bf16.xpose.msra.mxu0 0
    %763 = vmatprep.subr.bf16.mxu0 0
    %764 = vmatpush1.bf16.xpose.msra.mxu0 0
    %765 = vmatprep.subr.bf16.mxu0 0
    %766 = vmatpush1.bf16.xpose.msra.mxu0 0
    %767 = vmatprep.subr.bf16.mxu0 0
    %768 = vmatpush1.bf16.xpose.msra.mxu0 0
    %769 = vmatprep.subr.bf16.mxu0 0
    %770 = vmatpush1.bf16.xpose.msra.mxu0 0
    %771 = vmatprep.mubr.bf16.mxu0 0
    %772 = vmatmul.mubr.bf16.gmra.mrb[0].mxu0 %v734
    %v773 = vpop.f32.mrb[0].mxu0
    %v774 = vadd.f32 0.0, %v773
    %v775 = vpop.f32.mrb[0].mxu0
    %v776 = vpop.f32.mrb[0].mxu0
    %v777 = vpop.f32.mrb[0].mxu0
    %778 = vdwg.mxu0
    %v780 = vsel %vm594, %v574, 0
    %v783 = vsel %vm594, %v582, 0
    %785 = vmatprep.subr.bf16.mxu0 0
    %786 = vmatpush1.bf16.xpose.msra.mxu0 %v783
    %787 = vmatprep.subr.bf16.mxu0 0
    %788 = vmatpush1.bf16.xpose.msra.mxu0 0
    %789 = vmatprep.subr.bf16.mxu0 0
    %790 = vmatpush1.bf16.xpose.msra.mxu0 0
    %791 = vmatprep.subr.bf16.mxu0 0
    %792 = vmatpush1.bf16.xpose.msra.mxu0 0
    %793 = vmatprep.subr.bf16.mxu0 0
    %794 = vmatpush1.bf16.xpose.msra.mxu0 0
    %795 = vmatprep.subr.bf16.mxu0 0
    %796 = vmatpush1.bf16.xpose.msra.mxu0 0
    %797 = vmatprep.subr.bf16.mxu0 0
    %798 = vmatpush1.bf16.xpose.msra.mxu0 0
    %799 = vmatprep.subr.bf16.mxu0 0
    %800 = vmatpush1.bf16.xpose.msra.mxu0 0
    %801 = vmatprep.subr.bf16.mxu0 0
    %802 = vmatpush1.bf16.xpose.msra.mxu0 0
    %803 = vmatprep.subr.bf16.mxu0 0
    %804 = vmatpush1.bf16.xpose.msra.mxu0 0
    %805 = vmatprep.subr.bf16.mxu0 0
    %806 = vmatpush1.bf16.xpose.msra.mxu0 0
    %807 = vmatprep.subr.bf16.mxu0 0
    %808 = vmatpush1.bf16.xpose.msra.mxu0 0
    %809 = vmatprep.subr.bf16.mxu0 0
    %810 = vmatpush1.bf16.xpose.msra.mxu0 0
    %811 = vmatprep.subr.bf16.mxu0 0
    %812 = vmatpush1.bf16.xpose.msra.mxu0 0
    %813 = vmatprep.subr.bf16.mxu0 0
    %814 = vmatpush1.bf16.xpose.msra.mxu0 0
    %815 = vmatprep.subr.bf16.mxu0 0
    %816 = vmatpush1.bf16.xpose.msra.mxu0 0
    %817 = vmatprep.mubr.bf16.mxu0 0
    %818 = vmatmul.mubr.bf16.gmra.mrb[0].mxu0 %v780
    %v819 = vpop.f32.mrb[0].mxu0
    %v820 = vadd.f32 0.0, %v819
    %v821 = vpop.f32.mrb[0].mxu0
    %v822 = vpop.f32.mrb[0].mxu0
    %v823 = vpop.f32.mrb[0].mxu0
    %824 = vdwg.mxu0
    %v826 = vsel %vm594, %v575, 0
    %v829 = vsel %vm594, %v583, 0
    %831 = vmatprep.subr.bf16.mxu0 0
    %832 = vmatpush1.bf16.xpose.msra.mxu0 %v829
    %833 = vmatprep.subr.bf16.mxu0 0
    %834 = vmatpush1.bf16.xpose.msra.mxu0 0
    %835 = vmatprep.subr.bf16.mxu0 0
    %836 = vmatpush1.bf16.xpose.msra.mxu0 0
    %837 = vmatprep.subr.bf16.mxu0 0
    %838 = vmatpush1.bf16.xpose.msra.mxu0 0
    %839 = vmatprep.subr.bf16.mxu0 0
    %840 = vmatpush1.bf16.xpose.msra.mxu0 0
    %841 = vmatprep.subr.bf16.mxu0 0
    %842 = vmatpush1.bf16.xpose.msra.mxu0 0
    %843 = vmatprep.subr.bf16.mxu0 0
    %844 = vmatpush1.bf16.xpose.msra.mxu0 0
    %845 = vmatprep.subr.bf16.mxu0 0
    %846 = vmatpush1.bf16.xpose.msra.mxu0 0
    %847 = vmatprep.subr.bf16.mxu0 0
    %848 = vmatpush1.bf16.xpose.msra.mxu0 0
    %849 = vmatprep.subr.bf16.mxu0 0
    %850 = vmatpush1.bf16.xpose.msra.mxu0 0
    %851 = vmatprep.subr.bf16.mxu0 0
    %852 = vmatpush1.bf16.xpose.msra.mxu0 0
    %853 = vmatprep.subr.bf16.mxu0 0
    %854 = vmatpush1.bf16.xpose.msra.mxu0 0
    %855 = vmatprep.subr.bf16.mxu0 0
    %856 = vmatpush1.bf16.xpose.msra.mxu0 0
    %857 = vmatprep.subr.bf16.mxu0 0
    %858 = vmatpush1.bf16.xpose.msra.mxu0 0
    %859 = vmatprep.subr.bf16.mxu0 0
    %860 = vmatpush1.bf16.xpose.msra.mxu0 0
    %861 = vmatprep.subr.bf16.mxu0 0
    %862 = vmatpush1.bf16.xpose.msra.mxu0 0
    %863 = vmatprep.mubr.bf16.mxu0 0
    %864 = vmatmul.mubr.bf16.gmra.mrb[0].mxu0 %v826
    %v865 = vpop.f32.mrb[0].mxu0
    %v866 = vadd.f32 0.0, %v865
    %v867 = vpop.f32.mrb[0].mxu0
    %v868 = vpop.f32.mrb[0].mxu0
    %v869 = vpop.f32.mrb[0].mxu0
    %870 = vdwg.mxu0
    %v872 = vsel %vm594, %v576, 0
    %v875 = vsel %vm594, %v584, 0
    %877 = vmatprep.subr.bf16.mxu0 0
    %878 = vmatpush1.bf16.xpose.msra.mxu0 %v875
    %879 = vmatprep.subr.bf16.mxu0 0
    %880 = vmatpush1.bf16.xpose.msra.mxu0 0
    %881 = vmatprep.subr.bf16.mxu0 0
    %882 = vmatpush1.bf16.xpose.msra.mxu0 0
    %883 = vmatprep.subr.bf16.mxu0 0
    %884 = vmatpush1.bf16.xpose.msra.mxu0 0
    %885 = vmatprep.subr.bf16.mxu0 0
    %886 = vmatpush1.bf16.xpose.msra.mxu0 0
    %887 = vmatprep.subr.bf16.mxu0 0
    %888 = vmatpush1.bf16.xpose.msra.mxu0 0
    %889 = vmatprep.subr.bf16.mxu0 0
    %890 = vmatpush1.bf16.xpose.msra.mxu0 0
    %891 = vmatprep.subr.bf16.mxu0 0
    %892 = vmatpush1.bf16.xpose.msra.mxu0 0
    %893 = vmatprep.subr.bf16.mxu0 0
    %894 = vmatpush1.bf16.xpose.msra.mxu0 0
    %895 = vmatprep.subr.bf16.mxu0 0
    %896 = vmatpush1.bf16.xpose.msra.mxu0 0
    %897 = vmatprep.subr.bf16.mxu0 0
    %898 = vmatpush1.bf16.xpose.msra.mxu0 0
    %899 = vmatprep.subr.bf16.mxu0 0
    %900 = vmatpush1.bf16.xpose.msra.mxu0 0
    %901 = vmatprep.subr.bf16.mxu0 0
    %902 = vmatpush1.bf16.xpose.msra.mxu0 0
    %903 = vmatprep.subr.bf16.mxu0 0
    %904 = vmatpush1.bf16.xpose.msra.mxu0 0
    %905 = vmatprep.subr.bf16.mxu0 0
    %906 = vmatpush1.bf16.xpose.msra.mxu0 0
    %907 = vmatprep.subr.bf16.mxu0 0
    %908 = vmatpush1.bf16.xpose.msra.mxu0 0
    %909 = vmatprep.mubr.bf16.mxu0 0
    %910 = vmatmul.mubr.bf16.gmra.mrb[0].mxu0 %v872
    %v911 = vpop.f32.mrb[0].mxu0
    %v912 = vadd.f32 0.0, %v911
    %v913 = vpop.f32.mrb[0].mxu0
    %v914 = vpop.f32.mrb[0].mxu0
    %v915 = vpop.f32.mrb[0].mxu0
    %916 = vdwg.mxu0
    %v918 = vsel %vm594, %v577, 0
    %v921 = vsel %vm594, %v585, 0
    %923 = vmatprep.subr.bf16.mxu0 0
    %924 = vmatpush1.bf16.xpose.msra.mxu0 %v921
    %925 = vmatprep.subr.bf16.mxu0 0
    %926 = vmatpush1.bf16.xpose.msra.mxu0 0
    %927 = vmatprep.subr.bf16.mxu0 0
    %928 = vmatpush1.bf16.xpose.msra.mxu0 0
    %929 = vmatprep.subr.bf16.mxu0 0
    %930 = vmatpush1.bf16.xpose.msra.mxu0 0
    %931 = vmatprep.subr.bf16.mxu0 0
    %932 = vmatpush1.bf16.xpose.msra.mxu0 0
    %933 = vmatprep.subr.bf16.mxu0 0
    %934 = vmatpush1.bf16.xpose.msra.mxu0 0
    %935 = vmatprep.subr.bf16.mxu0 0
    %936 = vmatpush1.bf16.xpose.msra.mxu0 0
    %937 = vmatprep.subr.bf16.mxu0 0
    %938 = vmatpush1.bf16.xpose.msra.mxu0 0
    %939 = vmatprep.subr.bf16.mxu0 0
    %940 = vmatpush1.bf16.xpose.msra.mxu0 0
    %941 = vmatprep.subr.bf16.mxu0 0
    %942 = vmatpush1.bf16.xpose.msra.mxu0 0
    %943 = vmatprep.subr.bf16.mxu0 0
    %944 = vmatpush1.bf16.xpose.msra.mxu0 0
    %945 = vmatprep.subr.bf16.mxu0 0
    %946 = vmatpush1.bf16.xpose.msra.mxu0 0
    %947 = vmatprep.subr.bf16.mxu0 0
    %948 = vmatpush1.bf16.xpose.msra.mxu0 0
    %949 = vmatprep.subr.bf16.mxu0 0
    %950 = vmatpush1.bf16.xpose.msra.mxu0 0
    %951 = vmatprep.subr.bf16.mxu0 0
    %952 = vmatpush1.bf16.xpose.msra.mxu0 0
    %953 = vmatprep.subr.bf16.mxu0 0
    %954 = vmatpush1.bf16.xpose.msra.mxu0 0
    %955 = vmatprep.mubr.bf16.mxu0 0
    %956 = vmatmul.mubr.bf16.gmra.mrb[0].mxu0 %v918
    %v957 = vpop.f32.mrb[0].mxu0
    %v958 = vadd.f32 0.0, %v957
    %v959 = vpop.f32.mrb[0].mxu0
    %v960 = vpop.f32.mrb[0].mxu0
    %v961 = vpop.f32.mrb[0].mxu0
    %962 = vdwg.mxu0
    %v963 = vsel %vm594, %v636, -inf
    %964 = vmax.xlane.f32.xlu0 %v963
    %v965 = vpop.xlane.xlu0 %964
    %v966 = vsel %vm594, %v682, -inf
    %967 = vmax.xlane.f32.xlu0 %v966
    %v968 = vpop.xlane.xlu0 %967
    %v969 = vsel %vm594, %v728, -inf
    %970 = vmax.xlane.f32.xlu0 %v969
    %v971 = vpop.xlane.xlu0 %970
    %v972 = vsel %vm594, %v774, -inf
    %973 = vmax.xlane.f32.xlu0 %v972
    %v974 = vpop.xlane.xlu0 %973
    %v975 = vsel %vm594, %v820, -inf
    %976 = vmax.xlane.f32.xlu0 %v975
    %v977 = vpop.xlane.xlu0 %976
    %v978 = vsel %vm594, %v866, -inf
    %979 = vmax.xlane.f32.xlu0 %v978
    %v980 = vpop.xlane.xlu0 %979
    %v981 = vsel %vm594, %v912, -inf
    %982 = vmax.xlane.f32.xlu0 %v981
    %v983 = vpop.xlane.xlu0 %982
    %v984 = vsel %vm594, %v958, -inf
    %985 = vmax.xlane.f32.xlu0 %v984
    %v986 = vpop.xlane.xlu0 %985
    %v987 = vsub.f32 %v636, %v965
    %v988 = vsub.f32 %v682, %v968
    %v989 = vsub.f32 %v728, %v971
    %v990 = vsub.f32 %v774, %v974
    %v991 = vsub.f32 %v820, %v977
    %v992 = vsub.f32 %v866, %v980
    %v993 = vsub.f32 %v912, %v983
    %v994 = vsub.f32 %v958, %v986
    %v995 = vmul.f32 %v987, 1.442695
    %v996 = vpow.pop %v995
    %v997 = vmul.f32 %v988, 1.442695
    %v998 = vpow.pop %v997
    %v999 = vmul.f32 %v989, 1.442695
    %v1000 = vpow.pop %v999
    %v1001 = vmul.f32 %v990, 1.442695
    %v1002 = vpow.pop %v1001
    %v1003 = vmul.f32 %v991, 1.442695
    %v1004 = vpow.pop %v1003
    %v1005 = vmul.f32 %v992, 1.442695
    %v1006 = vpow.pop %v1005
    %v1007 = vmul.f32 %v993, 1.442695
    %v1008 = vpow.pop %v1007
    %v1009 = vmul.f32 %v994, 1.442695
    %v1010 = vpow.pop %v1009
    %v1011 = vsel %vm594, %v996, 0.0
    %1012 = vadd.xlane.f32.xlu0 %v1011
    %v1013 = vpop.xlane.xlu0 %1012
    %v1014 = vsel %vm594, %v998, 0.0
    %1015 = vadd.xlane.f32.xlu0 %v1014
    %v1016 = vpop.xlane.xlu0 %1015
    %v1017 = vsel %vm594, %v1000, 0.0
    %1018 = vadd.xlane.f32.xlu0 %v1017
    %v1019 = vpop.xlane.xlu0 %1018
    %v1020 = vsel %vm594, %v1002, 0.0
    %1021 = vadd.xlane.f32.xlu0 %v1020
    %v1022 = vpop.xlane.xlu0 %1021
    %v1023 = vsel %vm594, %v1004, 0.0
    %1024 = vadd.xlane.f32.xlu0 %v1023
    %v1025 = vpop.xlane.xlu0 %1024
    %v1026 = vsel %vm594, %v1006, 0.0
    %1027 = vadd.xlane.f32.xlu0 %v1026
    %v1028 = vpop.xlane.xlu0 %1027
    %v1029 = vsel %vm594, %v1008, 0.0
    %1030 = vadd.xlane.f32.xlu0 %v1029
    %v1031 = vpop.xlane.xlu0 %1030
    %v1032 = vsel %vm594, %v1010, 0.0
    %1033 = vadd.xlane.f32.xlu0 %v1032
    %v1034 = vpop.xlane.xlu0 %1033
    %v1035 = vrcp.pop %v1013
    %v1036 = vrcp.pop %v1016
    %v1037 = vrcp.pop %v1019
    %v1038 = vrcp.pop %v1022
    %v1039 = vrcp.pop %v1025
    %v1040 = vrcp.pop %v1028
    %v1041 = vrcp.pop %v1031
    %v1042 = vrcp.pop %v1034
    %v1043 = vmul.f32 %v996, %v1035
    %v1044 = vmul.f32 %v998, %v1036
    %v1045 = vmul.f32 %v1000, %v1037
    %v1046 = vmul.f32 %v1002, %v1038
    %v1047 = vmul.f32 %v1004, %v1039
    %v1048 = vmul.f32 %v1006, %v1040
    %v1049 = vmul.f32 %v1008, %v1041
    %v1050 = vmul.f32 %v1010, %v1042
    %v1051 = vpack.c.bf16 %v1043, %v1043
    %v1052 = vpack.c.bf16 %v1044, %v1044
    %v1053 = vpack.c.bf16 %v1045, %v1045
    %v1054 = vpack.c.bf16 %v1046, %v1046
    %v1055 = vpack.c.bf16 %v1047, %v1047
    %v1056 = vpack.c.bf16 %v1048, %v1048
    %v1057 = vpack.c.bf16 %v1049, %v1049
    %v1058 = vpack.c.bf16 %v1050, %v1050
    %v1060 = vsel %vm594, %v1051, 0
    %vm1062 = vcmask 1043456
    %v1064 = vsel %vm1062, %v586, 0
    %1066 = vmatprep.subr.bf16.mxu0 0
    %1067 = vmatpush1.bf16.msra.mxu0 %v1064
    %1068 = vmatprep.subr.bf16.mxu0 0
    %1069 = vmatpush1.bf16.msra.mxu0 0
    %1070 = vmatprep.subr.bf16.mxu0 0
    %1071 = vmatpush1.bf16.msra.mxu0 0
    %1072 = vmatprep.subr.bf16.mxu0 0
    %1073 = vmatpush1.bf16.msra.mxu0 0
    %1074 = vmatprep.subr.bf16.mxu0 0
    %1075 = vmatpush1.bf16.msra.mxu0 0
    %1076 = vmatprep.subr.bf16.mxu0 0
    %1077 = vmatpush1.bf16.msra.mxu0 0
    %1078 = vmatprep.subr.bf16.mxu0 0
    %1079 = vmatpush1.bf16.msra.mxu0 0
    %1080 = vmatprep.subr.bf16.mxu0 0
    %1081 = vmatpush1.bf16.msra.mxu0 0
    %1082 = vmatprep.subr.bf16.mxu0 0
    %1083 = vmatpush1.bf16.msra.mxu0 0
    %1084 = vmatprep.subr.bf16.mxu0 0
    %1085 = vmatpush1.bf16.msra.mxu0 0
    %1086 = vmatprep.subr.bf16.mxu0 0
    %1087 = vmatpush1.bf16.msra.mxu0 0
    %1088 = vmatprep.subr.bf16.mxu0 0
    %1089 = vmatpush1.bf16.msra.mxu0 0
    %1090 = vmatprep.subr.bf16.mxu0 0
    %1091 = vmatpush1.bf16.msra.mxu0 0
    %1092 = vmatprep.subr.bf16.mxu0 0
    %1093 = vmatpush1.bf16.msra.mxu0 0
    %1094 = vmatprep.subr.bf16.mxu0 0
    %1095 = vmatpush1.bf16.msra.mxu0 0
    %1096 = vmatprep.subr.bf16.mxu0 0
    %1097 = vmatpush1.bf16.msra.mxu0 0
    %1098 = vmatprep.mubr.bf16.mxu0 0
    %1099 = vmatmul.mubr.bf16.gmra.mrb[0].mxu0 %v1060
    %v1100 = vpop.f32.mrb[0].mxu0
    %v1101 = vadd.f32 0.0, %v1100
    %v1102 = vpop.f32.mrb[0].mxu0
    %v1103 = vpop.f32.mrb[0].mxu0
    %v1104 = vpop.f32.mrb[0].mxu0
    %1105 = vdwg.mxu0
    %v1107 = vsel %vm594, %v1052, 0
    %v1110 = vsel %vm1062, %v587, 0
    %1112 = vmatprep.subr.bf16.mxu0 0
    %1113 = vmatpush1.bf16.msra.mxu0 %v1110
    %1114 = vmatprep.subr.bf16.mxu0 0
    %1115 = vmatpush1.bf16.msra.mxu0 0
    %1116 = vmatprep.subr.bf16.mxu0 0
    %1117 = vmatpush1.bf16.msra.mxu0 0
    %1118 = vmatprep.subr.bf16.mxu0 0
    %1119 = vmatpush1.bf16.msra.mxu0 0
    %1120 = vmatprep.subr.bf16.mxu0 0
    %1121 = vmatpush1.bf16.msra.mxu0 0
    %1122 = vmatprep.subr.bf16.mxu0 0
    %1123 = vmatpush1.bf16.msra.mxu0 0
    %1124 = vmatprep.subr.bf16.mxu0 0
    %1125 = vmatpush1.bf16.msra.mxu0 0
    %1126 = vmatprep.subr.bf16.mxu0 0
    %1127 = vmatpush1.bf16.msra.mxu0 0
    %1128 = vmatprep.subr.bf16.mxu0 0
    %1129 = vmatpush1.bf16.msra.mxu0 0
    %1130 = vmatprep.subr.bf16.mxu0 0
    %1131 = vmatpush1.bf16.msra.mxu0 0
    %1132 = vmatprep.subr.bf16.mxu0 0
    %1133 = vmatpush1.bf16.msra.mxu0 0
    %1134 = vmatprep.subr.bf16.mxu0 0
    %1135 = vmatpush1.bf16.msra.mxu0 0
    %1136 = vmatprep.subr.bf16.mxu0 0
    %1137 = vmatpush1.bf16.msra.mxu0 0
    %1138 = vmatprep.subr.bf16.mxu0 0
    %1139 = vmatpush1.bf16.msra.mxu0 0
    %1140 = vmatprep.subr.bf16.mxu0 0
    %1141 = vmatpush1.bf16.msra.mxu0 0
    %1142 = vmatprep.subr.bf16.mxu0 0
    %1143 = vmatpush1.bf16.msra.mxu0 0
    %1144 = vmatprep.mubr.bf16.mxu0 0
    %1145 = vmatmul.mubr.bf16.gmra.mrb[0].mxu0 %v1107
    %v1146 = vpop.f32.mrb[0].mxu0
    %v1147 = vadd.f32 0.0, %v1146
    %v1148 = vpop.f32.mrb[0].mxu0
    %v1149 = vpop.f32.mrb[0].mxu0
    %v1150 = vpop.f32.mrb[0].mxu0
    %1151 = vdwg.mxu0
    %v1153 = vsel %vm594, %v1053, 0
    %v1156 = vsel %vm1062, %v588, 0
    %1158 = vmatprep.subr.bf16.mxu0 0
    %1159 = vmatpush1.bf16.msra.mxu0 %v1156
    %1160 = vmatprep.subr.bf16.mxu0 0
    %1161 = vmatpush1.bf16.msra.mxu0 0
    %1162 = vmatprep.subr.bf16.mxu0 0
    %1163 = vmatpush1.bf16.msra.mxu0 0
    %1164 = vmatprep.subr.bf16.mxu0 0
    %1165 = vmatpush1.bf16.msra.mxu0 0
    %1166 = vmatprep.subr.bf16.mxu0 0
    %1167 = vmatpush1.bf16.msra.mxu0 0
    %1168 = vmatprep.subr.bf16.mxu0 0
    %1169 = vmatpush1.bf16.msra.mxu0 0
    %1170 = vmatprep.subr.bf16.mxu0 0
    %1171 = vmatpush1.bf16.msra.mxu0 0
    %1172 = vmatprep.subr.bf16.mxu0 0
    %1173 = vmatpush1.bf16.msra.mxu0 0
    %1174 = vmatprep.subr.bf16.mxu0 0
    %1175 = vmatpush1.bf16.msra.mxu0 0
    %1176 = vmatprep.subr.bf16.mxu0 0
    %1177 = vmatpush1.bf16.msra.mxu0 0
    %1178 = vmatprep.subr.bf16.mxu0 0
    %1179 = vmatpush1.bf16.msra.mxu0 0
    %1180 = vmatprep.subr.bf16.mxu0 0
    %1181 = vmatpush1.bf16.msra.mxu0 0
    %1182 = vmatprep.subr.bf16.mxu0 0
    %1183 = vmatpush1.bf16.msra.mxu0 0
    %1184 = vmatprep.subr.bf16.mxu0 0
    %1185 = vmatpush1.bf16.msra.mxu0 0
    %1186 = vmatprep.subr.bf16.mxu0 0
    %1187 = vmatpush1.bf16.msra.mxu0 0
    %1188 = vmatprep.subr.bf16.mxu0 0
    %1189 = vmatpush1.bf16.msra.mxu0 0
    %1190 = vmatprep.mubr.bf16.mxu0 0
    %1191 = vmatmul.mubr.bf16.gmra.mrb[0].mxu0 %v1153
    %v1192 = vpop.f32.mrb[0].mxu0
    %v1193 = vadd.f32 0.0, %v1192
    %v1194 = vpop.f32.mrb[0].mxu0
    %v1195 = vpop.f32.mrb[0].mxu0
    %v1196 = vpop.f32.mrb[0].mxu0
    %1197 = vdwg.mxu0
    %v1199 = vsel %vm594, %v1054, 0
    %v1202 = vsel %vm1062, %v589, 0
    %1204 = vmatprep.subr.bf16.mxu0 0
    %1205 = vmatpush1.bf16.msra.mxu0 %v1202
    %1206 = vmatprep.subr.bf16.mxu0 0
    %1207 = vmatpush1.bf16.msra.mxu0 0
    %1208 = vmatprep.subr.bf16.mxu0 0
    %1209 = vmatpush1.bf16.msra.mxu0 0
    %1210 = vmatprep.subr.bf16.mxu0 0
    %1211 = vmatpush1.bf16.msra.mxu0 0
    %1212 = vmatprep.subr.bf16.mxu0 0
    %1213 = vmatpush1.bf16.msra.mxu0 0
    %1214 = vmatprep.subr.bf16.mxu0 0
    %1215 = vmatpush1.bf16.msra.mxu0 0
    %1216 = vmatprep.subr.bf16.mxu0 0
    %1217 = vmatpush1.bf16.msra.mxu0 0
    %1218 = vmatprep.subr.bf16.mxu0 0
    %1219 = vmatpush1.bf16.msra.mxu0 0
    %1220 = vmatprep.subr.bf16.mxu0 0
    %1221 = vmatpush1.bf16.msra.mxu0 0
    %1222 = vmatprep.subr.bf16.mxu0 0
    %1223 = vmatpush1.bf16.msra.mxu0 0
    %1224 = vmatprep.subr.bf16.mxu0 0
    %1225 = vmatpush1.bf16.msra.mxu0 0
    %1226 = vmatprep.subr.bf16.mxu0 0
    %1227 = vmatpush1.bf16.msra.mxu0 0
    %1228 = vmatprep.subr.bf16.mxu0 0
    %1229 = vmatpush1.bf16.msra.mxu0 0
    %1230 = vmatprep.subr.bf16.mxu0 0
    %1231 = vmatpush1.bf16.msra.mxu0 0
    %1232 = vmatprep.subr.bf16.mxu0 0
    %1233 = vmatpush1.bf16.msra.mxu0 0
    %1234 = vmatprep.subr.bf16.mxu0 0
    %1235 = vmatpush1.bf16.msra.mxu0 0
    %1236 = vmatprep.mubr.bf16.mxu0 0
    %1237 = vmatmul.mubr.bf16.gmra.mrb[0].mxu0 %v1199
    %v1238 = vpop.f32.mrb[0].mxu0
    %v1239 = vadd.f32 0.0, %v1238
    %v1240 = vpop.f32.mrb[0].mxu0
    %v1241 = vpop.f32.mrb[0].mxu0
    %v1242 = vpop.f32.mrb[0].mxu0
    %1243 = vdwg.mxu0
    %v1245 = vsel %vm594, %v1055, 0
    %v1248 = vsel %vm1062, %v590, 0
    %1250 = vmatprep.subr.bf16.mxu0 0
    %1251 = vmatpush1.bf16.msra.mxu0 %v1248
    %1252 = vmatprep.subr.bf16.mxu0 0
    %1253 = vmatpush1.bf16.msra.mxu0 0
    %1254 = vmatprep.subr.bf16.mxu0 0
    %1255 = vmatpush1.bf16.msra.mxu0 0
    %1256 = vmatprep.subr.bf16.mxu0 0
    %1257 = vmatpush1.bf16.msra.mxu0 0
    %1258 = vmatprep.subr.bf16.mxu0 0
    %1259 = vmatpush1.bf16.msra.mxu0 0
    %1260 = vmatprep.subr.bf16.mxu0 0
    %1261 = vmatpush1.bf16.msra.mxu0 0
    %1262 = vmatprep.subr.bf16.mxu0 0
    %1263 = vmatpush1.bf16.msra.mxu0 0
    %1264 = vmatprep.subr.bf16.mxu0 0
    %1265 = vmatpush1.bf16.msra.mxu0 0
    %1266 = vmatprep.subr.bf16.mxu0 0
    %1267 = vmatpush1.bf16.msra.mxu0 0
    %1268 = vmatprep.subr.bf16.mxu0 0
    %1269 = vmatpush1.bf16.msra.mxu0 0
    %1270 = vmatprep.subr.bf16.mxu0 0
    %1271 = vmatpush1.bf16.msra.mxu0 0
    %1272 = vmatprep.subr.bf16.mxu0 0
    %1273 = vmatpush1.bf16.msra.mxu0 0
    %1274 = vmatprep.subr.bf16.mxu0 0
    %1275 = vmatpush1.bf16.msra.mxu0 0
    %1276 = vmatprep.subr.bf16.mxu0 0
    %1277 = vmatpush1.bf16.msra.mxu0 0
    %1278 = vmatprep.subr.bf16.mxu0 0
    %1279 = vmatpush1.bf16.msra.mxu0 0
    %1280 = vmatprep.subr.bf16.mxu0 0
    %1281 = vmatpush1.bf16.msra.mxu0 0
    %1282 = vmatprep.mubr.bf16.mxu0 0
    %1283 = vmatmul.mubr.bf16.gmra.mrb[0].mxu0 %v1245
    %v1284 = vpop.f32.mrb[0].mxu0
    %v1285 = vadd.f32 0.0, %v1284
    %v1286 = vpop.f32.mrb[0].mxu0
    %v1287 = vpop.f32.mrb[0].mxu0
    %v1288 = vpop.f32.mrb[0].mxu0
    %1289 = vdwg.mxu0
    %v1291 = vsel %vm594, %v1056, 0
    %v1294 = vsel %vm1062, %v591, 0
    %1296 = vmatprep.subr.bf16.mxu0 0
    %1297 = vmatpush1.bf16.msra.mxu0 %v1294
    %1298 = vmatprep.subr.bf16.mxu0 0
    %1299 = vmatpush1.bf16.msra.mxu0 0
    %1300 = vmatprep.subr.bf16.mxu0 0
    %1301 = vmatpush1.bf16.msra.mxu0 0
    %1302 = vmatprep.subr.bf16.mxu0 0
    %1303 = vmatpush1.bf16.msra.mxu0 0
    %1304 = vmatprep.subr.bf16.mxu0 0
    %1305 = vmatpush1.bf16.msra.mxu0 0
    %1306 = vmatprep.subr.bf16.mxu0 0
    %1307 = vmatpush1.bf16.msra.mxu0 0
    %1308 = vmatprep.subr.bf16.mxu0 0
    %1309 = vmatpush1.bf16.msra.mxu0 0
    %1310 = vmatprep.subr.bf16.mxu0 0
    %1311 = vmatpush1.bf16.msra.mxu0 0
    %1312 = vmatprep.subr.bf16.mxu0 0
    %1313 = vmatpush1.bf16.msra.mxu0 0
    %1314 = vmatprep.subr.bf16.mxu0 0
    %1315 = vmatpush1.bf16.msra.mxu0 0
    %1316 = vmatprep.subr.bf16.mxu0 0
    %1317 = vmatpush1.bf16.msra.mxu0 0
    %1318 = vmatprep.subr.bf16.mxu0 0
    %1319 = vmatpush1.bf16.msra.mxu0 0
    %1320 = vmatprep.subr.bf16.mxu0 0
    %1321 = vmatpush1.bf16.msra.mxu0 0
    %1322 = vmatprep.subr.bf16.mxu0 0
    %1323 = vmatpush1.bf16.msra.mxu0 0
    %1324 = vmatprep.subr.bf16.mxu0 0
    %1325 = vmatpush1.bf16.msra.mxu0 0
    %1326 = vmatprep.subr.bf16.mxu0 0
    %1327 = vmatpush1.bf16.msra.mxu0 0
    %1328 = vmatprep.mubr.bf16.mxu0 0
    %1329 = vmatmul.mubr.bf16.gmra.mrb[0].mxu0 %v1291
    %v1330 = vpop.f32.mrb[0].mxu0
    %v1331 = vadd.f32 0.0, %v1330
    %v1332 = vpop.f32.mrb[0].mxu0
    %v1333 = vpop.f32.mrb[0].mxu0
    %v1334 = vpop.f32.mrb[0].mxu0
    %1335 = vdwg.mxu0
    %v1337 = vsel %vm594, %v1057, 0
    %v1340 = vsel %vm1062, %v592, 0
    %1342 = vmatprep.subr.bf16.mxu0 0
    %1343 = vmatpush1.bf16.msra.mxu0 %v1340
    %1344 = vmatprep.subr.bf16.mxu0 0
    %1345 = vmatpush1.bf16.msra.mxu0 0
    %1346 = vmatprep.subr.bf16.mxu0 0
    %1347 = vmatpush1.bf16.msra.mxu0 0
    %1348 = vmatprep.subr.bf16.mxu0 0
    %1349 = vmatpush1.bf16.msra.mxu0 0
    %1350 = vmatprep.subr.bf16.mxu0 0
    %1351 = vmatpush1.bf16.msra.mxu0 0
    %1352 = vmatprep.subr.bf16.mxu0 0
    %1353 = vmatpush1.bf16.msra.mxu0 0
    %1354 = vmatprep.subr.bf16.mxu0 0
    %1355 = vmatpush1.bf16.msra.mxu0 0
    %1356 = vmatprep.subr.bf16.mxu0 0
    %1357 = vmatpush1.bf16.msra.mxu0 0
    %1358 = vmatprep.subr.bf16.mxu0 0
    %1359 = vmatpush1.bf16.msra.mxu0 0
    %1360 = vmatprep.subr.bf16.mxu0 0
    %1361 = vmatpush1.bf16.msra.mxu0 0
    %1362 = vmatprep.subr.bf16.mxu0 0
    %1363 = vmatpush1.bf16.msra.mxu0 0
    %1364 = vmatprep.subr.bf16.mxu0 0
    %1365 = vmatpush1.bf16.msra.mxu0 0
    %1366 = vmatprep.subr.bf16.mxu0 0
    %1367 = vmatpush1.bf16.msra.mxu0 0
    %1368 = vmatprep.subr.bf16.mxu0 0
    %1369 = vmatpush1.bf16.msra.mxu0 0
    %1370 = vmatprep.subr.bf16.mxu0 0
    %1371 = vmatpush1.bf16.msra.mxu0 0
    %1372 = vmatprep.subr.bf16.mxu0 0
    %1373 = vmatpush1.bf16.msra.mxu0 0
    %1374 = vmatprep.mubr.bf16.mxu0 0
    %1375 = vmatmul.mubr.bf16.gmra.mrb[0].mxu0 %v1337
    %v1376 = vpop.f32.mrb[0].mxu0
    %v1377 = vadd.f32 0.0, %v1376
    %v1378 = vpop.f32.mrb[0].mxu0
    %v1379 = vpop.f32.mrb[0].mxu0
    %v1380 = vpop.f32.mrb[0].mxu0
    %1381 = vdwg.mxu0
    %v1383 = vsel %vm594, %v1058, 0
    %v1386 = vsel %vm1062, %v593, 0
    %1388 = vmatprep.subr.bf16.mxu0 0
    %1389 = vmatpush1.bf16.msra.mxu0 %v1386
    %1390 = vmatprep.subr.bf16.mxu0 0
    %1391 = vmatpush1.bf16.msra.mxu0 0
    %1392 = vmatprep.subr.bf16.mxu0 0
    %1393 = vmatpush1.bf16.msra.mxu0 0
    %1394 = vmatprep.subr.bf16.mxu0 0
    %1395 = vmatpush1.bf16.msra.mxu0 0
    %1396 = vmatprep.subr.bf16.mxu0 0
    %1397 = vmatpush1.bf16.msra.mxu0 0
    %1398 = vmatprep.subr.bf16.mxu0 0
    %1399 = vmatpush1.bf16.msra.mxu0 0
    %1400 = vmatprep.subr.bf16.mxu0 0
    %1401 = vmatpush1.bf16.msra.mxu0 0
    %1402 = vmatprep.subr.bf16.mxu0 0
    %1403 = vmatpush1.bf16.msra.mxu0 0
    %1404 = vmatprep.subr.bf16.mxu0 0
    %1405 = vmatpush1.bf16.msra.mxu0 0
    %1406 = vmatprep.subr.bf16.mxu0 0
    %1407 = vmatpush1.bf16.msra.mxu0 0
    %1408 = vmatprep.subr.bf16.mxu0 0
    %1409 = vmatpush1.bf16.msra.mxu0 0
    %1410 = vmatprep.subr.bf16.mxu0 0
    %1411 = vmatpush1.bf16.msra.mxu0 0
    %1412 = vmatprep.subr.bf16.mxu0 0
    %1413 = vmatpush1.bf16.msra.mxu0 0
    %1414 = vmatprep.subr.bf16.mxu0 0
    %1415 = vmatpush1.bf16.msra.mxu0 0
    %1416 = vmatprep.subr.bf16.mxu0 0
    %1417 = vmatpush1.bf16.msra.mxu0 0
    %1418 = vmatprep.subr.bf16.mxu0 0
    %1419 = vmatpush1.bf16.msra.mxu0 0
    %1420 = vmatprep.mubr.bf16.mxu0 0
    %1421 = vmatmul.mubr.bf16.gmra.mrb[0].mxu0 %v1383
    %v1422 = vpop.f32.mrb[0].mxu0
    %v1423 = vadd.f32 0.0, %v1422
    %v1424 = vpop.f32.mrb[0].mxu0
    %v1425 = vpop.f32.mrb[0].mxu0
    %v1426 = vpop.f32.mrb[0].mxu0
    %1427 = vdwg.mxu0
    %v1428 = vpack.c.bf16 %v1101, %v1101
    %v1429 = vpack.c.bf16 %v1147, %v1147
    %v1430 = vpack.c.bf16 %v1193, %v1193
    %v1431 = vpack.c.bf16 %v1239, %v1239
    %v1432 = vpack.c.bf16 %v1285, %v1285
    %v1433 = vpack.c.bf16 %v1331, %v1331
    %v1434 = vpack.c.bf16 %v1377, %v1377
    %v1435 = vpack.c.bf16 %v1423, %v1423
    %1436 = vst.msk [vmem:[#allocation7] sm:$0xf] %vm476, %v1428
    %1437 = vst.msk [vmem:[#allocation7 + $0x4] sm:$0xf] %vm476, %v1429
    %v1440 = vunpack.c.l.b16 %v1430
    %v1441 = vunpack.c.l.b16 %v1431
    %v1442 = vpack.c.b16 %v1440, %v1440
    %v1443 = vpack.c.b16 %v1441, %v1441
    %1444 = vrot.lane.b32.xlu0 %v1442, 8
    %v1445 = vpop.permute.xlu0 %1444
    %1446 = vrot.lane.b32.xlu0 %v1443, 8
    %v1447 = vpop.permute.xlu0 %1446
    %vm1450 = vcmask 126016
    %1451 = vst.msk [vmem:[#allocation7] sm:$0xf] %vm1450, %v1445
    %1452 = vst.msk [vmem:[#allocation7 + $0x4] sm:$0xf] %vm1450, %v1447
    %v1455 = vunpack.c.l.b16 %v1432
    %v1456 = vunpack.c.l.b16 %v1433
    %v1457 = vpack.c.b16 %v1455, %v1455
    %v1458 = vpack.c.b16 %v1456, %v1456
    %1459 = vrot.lane.b32.xlu0 %v1457, 16
    %v1460 = vpop.permute.xlu0 %1459
    %1461 = vrot.lane.b32.xlu0 %v1458, 16
    %v1462 = vpop.permute.xlu0 %1461
    %vm1465 = vcmask 191616
    %1466 = vst.msk [vmem:[#allocation7] sm:$0xf] %vm1465, %v1460
    %1467 = vst.msk [vmem:[#allocation7 + $0x4] sm:$0xf] %vm1465, %v1462
    %v1470 = vunpack.c.l.b16 %v1434
    %v1471 = vunpack.c.l.b16 %v1435
    %v1472 = vpack.c.b16 %v1470, %v1470
    %v1473 = vpack.c.b16 %v1471, %v1471
    %1474 = vrot.lane.b32.xlu0 %v1472, 24
    %v1475 = vpop.permute.xlu0 %1474
    %1476 = vrot.lane.b32.xlu0 %v1473, 24
    %v1477 = vpop.permute.xlu0 %1476
    %vm1480 = vcmask 257216
    %1481 = vst.msk [vmem:[#allocation7] sm:$0xf] %vm1480, %v1475
    %1482 = vst.msk [vmem:[#allocation7 + $0x4] sm:$0xf] %vm1480, %v1477
    %v1483 = vld [vmem:[#allocation7] sm:$0xf]
    %v1484 = vld [vmem:[#allocation7 + $0x4] sm:$0xf]
    %v1485 = vld [vmem:[#allocation16] sm:$0xf]
    %v1486 = vld [vmem:[#allocation16 + $0x4] sm:$0xf]
    %v1487 = vld [vmem:[#allocation16 + $0x8] sm:$0xf]
    %v1488 = vld [vmem:[#allocation16 + $0xc] sm:$0xf]
    %v1489 = vld [vmem:[%s5 + $0x2] sm:$0x1]
    %v1490 = vlaneseq
    %v1491 = vshrl.u32 %v1490, 7
    %v1492 = vsub.s32 0, %v1491
    %v1493 = vrot.slane %v1489, %v1492
    %v1496 = vunpack.c.l.b16 %v1483
    %v1497 = vunpack.c.l.b16 %v1484
    %v1498 = vpack.c.b16 %v1497, %v1496
    %v1503 = vunpack.c.l.b16 %v1485
    %v1504 = vunpack.c.l.b16 %v1486
    %v1505 = vunpack.c.l.b16 %v1487
    %v1506 = vunpack.c.l.b16 %v1488
    %v1507 = vpack.c.b16 %v1504, %v1503
    %v1508 = vpack.c.b16 %v1506, %v1505
    %v1512 = vsel %vm131, %v1498, 0
    %1514 = vmatprep.subr.bf16.mxu0 0
    %1515 = vmatpush1.bf16.msra.mxu0 %v1507
    %1516 = vmatprep.subr.bf16.mxu0 0
    %1517 = vmatpush1.bf16.msra.mxu0 %v1508
    %1518 = vmatprep.subr.bf16.mxu0 0
    %1519 = vmatpush1.bf16.msra.mxu0 0
    %1520 = vmatprep.subr.bf16.mxu0 0
    %1521 = vmatpush1.bf16.msra.mxu0 0
    %1522 = vmatprep.subr.bf16.mxu0 0
    %1523 = vmatpush1.bf16.msra.mxu0 0
    %1524 = vmatprep.subr.bf16.mxu0 0
    %1525 = vmatpush1.bf16.msra.mxu0 0
    %1526 = vmatprep.subr.bf16.mxu0 0
    %1527 = vmatpush1.bf16.msra.mxu0 0
    %1528 = vmatprep.subr.bf16.mxu0 0
    %1529 = vmatpush1.bf16.msra.mxu0 0
    %1530 = vmatprep.subr.bf16.mxu0 0
    %1531 = vmatpush1.bf16.msra.mxu0 0
    %1532 = vmatprep.subr.bf16.mxu0 0
    %1533 = vmatpush1.bf16.msra.mxu0 0
    %1534 = vmatprep.subr.bf16.mxu0 0
    %1535 = vmatpush1.bf16.msra.mxu0 0
    %1536 = vmatprep.subr.bf16.mxu0 0
    %1537 = vmatpush1.bf16.msra.mxu0 0
    %1538 = vmatprep.subr.bf16.mxu0 0
    %1539 = vmatpush1.bf16.msra.mxu0 0
    %1540 = vmatprep.subr.bf16.mxu0 0
    %1541 = vmatpush1.bf16.msra.mxu0 0
    %1542 = vmatprep.subr.bf16.mxu0 0
    %1543 = vmatpush1.bf16.msra.mxu0 0
    %1544 = vmatprep.subr.bf16.mxu0 0
    %1545 = vmatpush1.bf16.msra.mxu0 0
    %1546 = vmatprep.mubr.bf16.mxu0 0
    %1547 = vmatmul.mubr.bf16.gmra.mrb[0].mxu0 %v1512
    %v1548 = vpop.f32.mrb[0].mxu0
    %v1549 = vadd.f32 %v1493, %v1548
    %v1550 = vpop.f32.mrb[0].mxu0
    %v1551 = vpop.f32.mrb[0].mxu0
    %v1552 = vadd.f32 %v1493, %v1551
    %v1553 = vpop.f32.mrb[0].mxu0
    %1554 = vdwg.mxu0
    %v1555 = vld [vmem:[%s5 + $0x3] sm:$0x1]
    %v1556 = vld [vmem:[%s5 + $0x4] sm:$0x1]
    %v1557 = vld [vmem:[#allocation2] sm:$0xff]
    %v1558 = vld [vmem:[#allocation2 + $0x8] sm:$0xff]
    %v1559 = vadd.f32 %v1557, %v1549
    %v1560 = vadd.f32 %v1558, %v1552
    %v1561 = vsel %vm131, %v1559, 0.0
    %1562 = vadd.xlane.f32.xlu0 %v1561
    %v1563 = vpop.xlane.xlu0 %1562
    %v1564 = vsel %vm131, %v1560, 0.0
    %1565 = vadd.xlane.f32.xlu0 %v1564
    %v1566 = vpop.xlane.xlu0 %1565
    %v1567 = vrcp.pop 32.0
    %v1568 = vmul.f32 %v1563, %v1567
    %v1569 = vmul.f32 %v1566, %v1567
    %v1570 = vsub.f32 %v1559, %v1568
    %v1571 = vsub.f32 %v1560, %v1569
    %v1572 = vmul.f32 %v1570, %v1570
    %v1573 = vmul.f32 %v1571, %v1571
    %v1574 = vsel %vm131, %v1572, 0.0
    %1575 = vadd.xlane.f32.xlu0 %v1574
    %v1576 = vpop.xlane.xlu0 %1575
    %v1577 = vsel %vm131, %v1573, 0.0
    %1578 = vadd.xlane.f32.xlu0 %v1577
    %v1579 = vpop.xlane.xlu0 %1578
    %v1580 = vmul.f32 %v1576, %v1567
    %v1581 = vmul.f32 %v1579, %v1567
    %v1582 = vadd.f32 %v1580, 1e-05
    %v1583 = vadd.f32 %v1581, 1e-05
    %v1584 = vrsqrt.pop %v1582
    %v1585 = vrsqrt.pop %v1583
    %v1586 = vmul.f32 %v1570, %v1584
    %v1587 = vmul.f32 %v1571, %v1585
    %v1588 = vlaneseq
    %v1589 = vshrl.u32 %v1588, 7
    %v1590 = vsub.s32 0, %v1589
    %v1591 = vrot.slane %v1555, %v1590
    %v1592 = vmul.f32 %v1586, %v1591
    %v1593 = vmul.f32 %v1587, %v1591
    %v1594 = vlaneseq
    %v1595 = vshrl.u32 %v1594, 7
    %v1596 = vsub.s32 0, %v1595
    %v1597 = vrot.slane %v1556, %v1596
    %v1598 = vadd.f32 %v1592, %v1597
    %v1599 = vadd.f32 %v1593, %v1597
    %v1601 = vcombine.high %v1598, %v1598
    %v1603 = vunpack.c.l.s4 1966171168
    %v1604 = vunpack.c.0.s8 %v1603
    %v1605 = vlaneseq
    %v1606 = vshrl.u32 %v1605, 7
    %v1607 = vsub.s32 %v1604, %v1606
    %v1608 = vrot.slane %v1598, %v1607
    %v1610 = vunpack.c.l.s4 1966171168
    %v1611 = vunpack.c.0.s8 %v1610
    %v1612 = vlaneseq
    %v1613 = vshrl.u32 %v1612, 7
    %v1614 = vsub.s32 %v1611, %v1613
    %v1615 = vrot.slane %v1601, %v1614
    %v1616 = vcombine.high %v1608, %v1608
    %v1617 = vcombine.high %v1615, %v1615
    %v1619 = vunpack.c.l.s4 1966171168
    %v1620 = vunpack.c.0.s8 %v1619
    %v1621 = vlaneseq
    %v1622 = vshrl.u32 %v1621, 7
    %v1623 = vsub.s32 %v1620, %v1622
    %v1624 = vrot.slane %v1608, %v1623
    %v1626 = vunpack.c.l.s4 1966171168
    %v1627 = vunpack.c.0.s8 %v1626
    %v1628 = vlaneseq
    %v1629 = vshrl.u32 %v1628, 7
    %v1630 = vsub.s32 %v1627, %v1629
    %v1631 = vrot.slane %v1615, %v1630
    %v1633 = vunpack.c.l.s4 1966171168
    %v1634 = vunpack.c.0.s8 %v1633
    %v1635 = vlaneseq
    %v1636 = vshrl.u32 %v1635, 7
    %v1637 = vsub.s32 %v1634, %v1636
    %v1638 = vrot.slane %v1616, %v1637
    %v1640 = vunpack.c.l.s4 1966171168
    %v1641 = vunpack.c.0.s8 %v1640
    %v1642 = vlaneseq
    %v1643 = vshrl.u32 %v1642, 7
    %v1644 = vsub.s32 %v1641, %v1643
    %v1645 = vrot.slane %v1617, %v1644
    %v1646 = vcombine.high %v1624, %v1624
    %v1647 = vcombine.high %v1631, %v1631
    %v1648 = vcombine.high %v1638, %v1638
    %v1649 = vcombine.high %v1645, %v1645
    %vm1658 = vcmask 253952
    %1659 = vst.msk [vmem:[#allocation17] sm:$0x1] %vm1658, %v1624
    %1660 = vst.msk [vmem:[#allocation17 + $0x2] sm:$0x1] %vm1658, %v1638
    %1661 = vst.msk [vmem:[#allocation17 + $0x4] sm:$0x1] %vm1658, %v1646
    %1662 = vst.msk [vmem:[#allocation17 + $0x6] sm:$0x1] %vm1658, %v1648
    %1663 = vst.msk [vmem:[#allocation17 + $0x8] sm:$0x1] %vm1658, %v1631
    %1664 = vst.msk [vmem:[#allocation17 + $0xa] sm:$0x1] %vm1658, %v1645
    %1665 = vst.msk [vmem:[#allocation17 + $0xc] sm:$0x1] %vm1658, %v1647
    %1666 = vst.msk [vmem:[#allocation17 + $0xe] sm:$0x1] %vm1658, %v1649
    %v1668 = vcombine.high %v1599, %v1599
    %v1670 = vunpack.c.l.s4 1966171168
    %v1671 = vunpack.c.0.s8 %v1670
    %v1672 = vlaneseq
    %v1673 = vshrl.u32 %v1672, 7
    %v1674 = vsub.s32 %v1671, %v1673
    %v1675 = vrot.slane %v1599, %v1674
    %v1677 = vunpack.c.l.s4 1966171168
    %v1678 = vunpack.c.0.s8 %v1677
    %v1679 = vlaneseq
    %v1680 = vshrl.u32 %v1679, 7
    %v1681 = vsub.s32 %v1678, %v1680
    %v1682 = vrot.slane %v1668, %v1681
    %v1683 = vcombine.high %v1675, %v1675
    %v1684 = vcombine.high %v1682, %v1682
    %v1686 = vunpack.c.l.s4 1966171168
    %v1687 = vunpack.c.0.s8 %v1686
    %v1688 = vlaneseq
    %v1689 = vshrl.u32 %v1688, 7
    %v1690 = vsub.s32 %v1687, %v1689
    %v1691 = vrot.slane %v1675, %v1690
    %v1693 = vunpack.c.l.s4 1966171168
    %v1694 = vunpack.c.0.s8 %v1693
    %v1695 = vlaneseq
    %v1696 = vshrl.u32 %v1695, 7
    %v1697 = vsub.s32 %v1694, %v1696
    %v1698 = vrot.slane %v1682, %v1697
    %v1700 = vunpack.c.l.s4 1966171168
    %v1701 = vunpack.c.0.s8 %v1700
    %v1702 = vlaneseq
    %v1703 = vshrl.u32 %v1702, 7
    %v1704 = vsub.s32 %v1701, %v1703
    %v1705 = vrot.slane %v1683, %v1704
    %v1707 = vunpack.c.l.s4 1966171168
    %v1708 = vunpack.c.0.s8 %v1707
    %v1709 = vlaneseq
    %v1710 = vshrl.u32 %v1709, 7
    %v1711 = vsub.s32 %v1708, %v1710
    %v1712 = vrot.slane %v1684, %v1711
    %v1713 = vcombine.high %v1691, %v1691
    %v1714 = vcombine.high %v1698, %v1698
    %v1715 = vcombine.high %v1705, %v1705
    %v1716 = vcombine.high %v1712, %v1712
    %1725 = vst.msk [vmem:[#allocation17 + $0x1] sm:$0x1] %vm1658, %v1691
    %1726 = vst.msk [vmem:[#allocation17 + $0x3] sm:$0x1] %vm1658, %v1705
    %1727 = vst.msk [vmem:[#allocation17 + $0x5] sm:$0x1] %vm1658, %v1713
    %1728 = vst.msk [vmem:[#allocation17 + $0x7] sm:$0x1] %vm1658, %v1715
    %1729 = vst.msk [vmem:[#allocation17 + $0x9] sm:$0x1] %vm1658, %v1698
    %1730 = vst.msk [vmem:[#allocation17 + $0xb] sm:$0x1] %vm1658, %v1712
    %1731 = vst.msk [vmem:[#allocation17 + $0xd] sm:$0x1] %vm1658, %v1714
    %1732 = vst.msk [vmem:[#allocation17 + $0xf] sm:$0x1] %vm1658, %v1716
    // Predicated region
    $region46: #{tpu_custom_call.1} parent=1 // pred_check
      _
    $region47: #{tpu_custom_call.1} parent=1 // pred_check_branch
      %1734 = sbr.rel (0) target = $region49
    $region48: #{tpu_custom_call.1} parent=1 // pred_region
      %s1736 = ssub.s32 256, 256
      %1737 = vsyncadd [#allocation10], %s1736
      %s1738 = sshll.u32 [#allocation17], 4
      %s1739 = int_to_ptr.vmem [resolvable:$true] %s1738
      %1744 = dma.vmem_to_hbm [thread:$0]  %s1739, 256, %s6, [#allocation10], 32, 32, 2
    $region49: #{tpu_custom_call.1} parent=1 // pred_fallthru
      _
    // Predicated region
    $region50: #{tpu_custom_call.1} parent=1 // pred_check
      _
    $region51: #{tpu_custom_call.1} parent=1 // pred_check_branch
      %1746 = sbr.rel (0) target = $region53
    $region52: #{tpu_custom_call.1} parent=1 // pred_region
      %1747 = dma.done [#allocation10], 256
    $region53: #{tpu_custom_call.1} parent=1 // pred_fallthru
      _
    %1748 = vsyncpa [#allocation9], 1
    %1749 = vsyncpa [#allocation12], 1
    %1750 = vsyncpa [#allocation15], 1
    %1751 = vsyncpa [#allocation10], 1

</llo_original>
